<compile_context>
chip_gen: v6e
topology: v6e:2x2x1
jax: 0.10.0
libtpu: 0.0.40
codegen_flags: <defaults>
</compile_context>

<pallas_src>
import functools

import jax
import jax.numpy as jnp
import numpy as np
from jax.experimental import pallas as pl
from jax.experimental.pallas import tpu as pltpu


def _sigmoid(v):
    # One EUP transcendental (tanh) instead of exp + divide.
    return 0.5 * jnp.tanh(0.5 * v) + 0.5


def _round_up(v, m):
    return ((v + m - 1) // m) * m


def _lstm_kernel(x_ref, wih_ref, whh_ref, b_ref, wout_ref, bout_ref,
                 h0_ref, c0_ref, out_ref, pre_ref,
                 *, seq_len, hidden_pad, unroll):
    """One batch-block of the LSTM forward.

    x_ref   : (S, Bb, I)     time-major input block (mxu dtype)
    wih_ref : (I, 4*Hp)      fused, transposed input weights   [i|f|g|o]
    whh_ref : (Hp, 4*Hp)     fused, transposed recurrent weights
    b_ref   : (1, 4*Hp)      fused combined bias (f32)
    wout_ref: (Hp, Ip)       output projection (lane padded)
    bout_ref: (1, Ip)
    h0/c0   : (Bb, Hp)       f32 initial state block
    out_ref : (Bb, Ip)       f32 output block (lane-dense store)
    pre_ref : (S, Bb, 4*Hp)  pre-gate scratch (mxu dtype)
    """
    S = seq_len
    Hp = hidden_pad
    Bb = h0_ref.shape[0]
    I = x_ref.shape[-1]

    # --- Hoisted input projection: ONE fused (S*Bb, I) @ (I, 4*Hp) MXU matmul
    # covering every timestep and all four gates; bias broadcast added once. -
    x2d = x_ref[...].reshape(S * Bb, I)
    pre = (jnp.dot(x2d, wih_ref[...], preferred_element_type=jnp.float32)
           + b_ref[...])
    pre_ref[...] = pre.reshape(S, Bb, 4 * Hp).astype(pre_ref.dtype)

    # --- Serial recurrence: a single fused (Bb, Hp) @ (Hp, 4*Hp) matmul per
    # step.  W_hh is read from VMEM inside the loop (vld overlaps the matmul;
    # hoisting it into vregs would pin/spill the register file), and the 4*Hp
    # gate lanes are split with 128-lane-aligned static slices. -------------
    def step(t, carry):
        h, c = carry                                          # f32 (Bb, Hp)
        gates = (pre_ref[t].astype(jnp.float32)
                 + jnp.dot(h.astype(whh_ref.dtype), whh_ref[...],
                           preferred_element_type=jnp.float32))
        i_g = _sigmoid(gates[:, 0 * Hp:1 * Hp])
        f_g = _sigmoid(gates[:, 1 * Hp:2 * Hp])
        g_g = jnp.tanh(gates[:, 2 * Hp:3 * Hp])
        o_g = _sigmoid(gates[:, 3 * Hp:4 * Hp])
        c_new = f_g * c + i_g * g_g
        h_new = o_g * jnp.tanh(c_new)
        return h_new, c_new

    h_last, _ = jax.lax.fori_loop(0, S, step,
                                  (h0_ref[...], c0_ref[...]), unroll=unroll)

    # --- Epilogue: output projection.  Weights loaded only here (zero vreg
    # pressure inside the recurrence); 128-lane-dense unmasked store. -------
    out = (jnp.dot(h_last.astype(wout_ref.dtype), wout_ref[...],
                   preferred_element_type=jnp.float32) + bout_ref[...])
    out_ref[...] = out.astype(out_ref.dtype)


@functools.partial(jax.jit,
                   static_argnames=("mxu_dtype", "unroll", "batch_block"))
def lstm_forward(hidden_and_cell, x, params, *,
                 mxu_dtype=jnp.float32, unroll=8, batch_block=None):
    """Pallas equivalent of LSTM.forward(hidden_and_cell, x).

    x: (batch, seq, input); hidden_and_cell = (h0, c0), each (1, B, H).
    mxu_dtype=jnp.bfloat16 is recommended at real sizes (matmul operands
    only; accumulation, gate math and h/c state stay in f32).
    batch_block: split the padded batch across grid blocks (parallel axis,
    useful on v7x megacore when B is large).  None = one block.
    """
    h0, c0 = hidden_and_cell
    w_ih, w_hh, b_ih, b_hh, weight, bias = params
    B, S, I = x.shape
    H = w_hh.shape[1]                       # w_hh: (4H, H)

    itemsize = jnp.dtype(mxu_dtype).itemsize
    sublane = 8 * (4 // itemsize)           # 8 for f32, 16 for bf16
    H_pad = _round_up(H, 128)               # lane-aligned per-gate slices
    I_pad = _round_up(I, 128)               # lane-dense output store
    B_pad = _round_up(max(B, sublane), sublane)

    if batch_block is None:
        bb = B_pad
    else:
        bb = _round_up(max(int(batch_block), sublane), sublane)
        B_pad = _round_up(B_pad, bb)
    n_blocks = B_pad // bb

    if unroll is True:
        unroll_eff = S
    elif unroll is False:
        unroll_eff = 1
    else:
        unroll_eff = max(1, min(int(unroll), S))

    f32 = jnp.float32

    # x: (B,S,I) -> time-major, batch padded, mxu dtype.  Under jit the
    # transpose/pad/cast fuse into a single HBM pass.
    x3 = jnp.pad(jnp.transpose(x, (1, 0, 2)).astype(mxu_dtype),
                 ((0, 0), (0, B_pad - B), (0, 0)))

    # Fused gate weights, transposed so the kernel never slices along lanes.
    # Gate order (PyTorch): i, f, g, o; each gate occupies H_pad lanes.
    wih_f = jnp.pad(jnp.transpose(w_ih.reshape(4, H, I), (2, 0, 1)),   # (I,4,H)
                    ((0, 0), (0, 0), (0, H_pad - H))
                    ).reshape(I, 4 * H_pad).astype(mxu_dtype)
    whh_f = jnp.pad(jnp.transpose(w_hh.reshape(4, H, H), (2, 0, 1)),   # (H,4,H)
                    ((0, H_pad - H), (0, 0), (0, H_pad - H))
                    ).reshape(H_pad, 4 * H_pad).astype(mxu_dtype)
    b_f = jnp.pad((b_ih + b_hh).astype(f32).reshape(4, H),
                  ((0, 0), (0, H_pad - H))).reshape(1, 4 * H_pad)

    wout_p = jnp.pad(weight, ((0, H_pad - H), (0, I_pad - I))).astype(mxu_dtype)
    bout_p = jnp.pad(bias, (0, I_pad - I)).astype(f32).reshape(1, I_pad)

    h0_p = jnp.pad(h0[0], ((0, B_pad - B), (0, H_pad - H))).astype(f32)
    c0_p = jnp.pad(c0[0], ((0, B_pad - B), (0, H_pad - H))).astype(f32)

    # Explicit VMEM budget (single-block resident design).
    vmem_bytes = (
        2 * S * bb * I * itemsize                          # x block (dbl buf)
        + S * bb * 4 * H_pad * itemsize                    # pre-gate scratch
        + 2 * (I + H_pad) * 4 * H_pad * itemsize           # fused W_ih / W_hh
        + 2 * H_pad * I_pad * itemsize                     # out weight
        + 2 * (4 * H_pad + I_pad + 2 * bb * H_pad + bb * I_pad) * 4)
    vmem_limit = int(min(128 * 1024 * 1024,
                         max(32 * 1024 * 1024,
                             int(1.5 * vmem_bytes) + (4 << 20))))

    kernel = functools.partial(_lstm_kernel, seq_len=S, hidden_pad=H_pad,
                               unroll=unroll_eff)

    out_p = pl.pallas_call(
        kernel,
        out_shape=jax.ShapeDtypeStruct((B_pad, I_pad), f32),
        grid_spec=pltpu.PrefetchScalarGridSpec(
            num_scalar_prefetch=0,
            grid=(n_blocks,),                               # batch blocks
            in_specs=[
                pl.BlockSpec((S, bb, I), lambda i: (0, i, 0)),        # x
                pl.BlockSpec((I, 4 * H_pad), lambda i: (0, 0)),       # W_ih^T
                pl.BlockSpec((H_pad, 4 * H_pad), lambda i: (0, 0)),   # W_hh^T
                pl.BlockSpec((1, 4 * H_pad), lambda i: (0, 0)),       # bias
                pl.BlockSpec((H_pad, I_pad), lambda i: (0, 0)),       # W_out
                pl.BlockSpec((1, I_pad), lambda i: (0, 0)),           # b_out
                pl.BlockSpec((bb, H_pad), lambda i: (i, 0)),          # h0
                pl.BlockSpec((bb, H_pad), lambda i: (i, 0)),          # c0
            ],
            out_specs=pl.BlockSpec((bb, I_pad), lambda i: (i, 0)),
            scratch_shapes=[pltpu.VMEM((S, bb, 4 * H_pad), mxu_dtype)],
        ),
        compiler_params=pltpu.CompilerParams(
            dimension_semantics=("parallel",),
            vmem_limit_bytes=vmem_limit),
    )(x3, wih_f, whh_f, b_f, wout_p, bout_p, h0_p, c0_p)

    return out_p[:B, :I].astype(x.dtype)


def lstm_forward_ref(hidden_and_cell, x, params):
    """Pure-JAX reference (mirrors torch.nn.LSTM single layer + mm + bias)."""
    h0, c0 = hidden_and_cell
    w_ih, w_hh, b_ih, b_hh, weight, bias = params
    H = w_hh.shape[1]
    x_sbi = jnp.transpose(x, (1, 0, 2))

    def step(carry, x_t):
        h, c = carry
        gates = x_t @ w_ih.T + b_ih + h @ w_hh.T + b_hh
        i = jax.nn.sigmoid(gates[:, 0 * H:1 * H])
        f = jax.nn.sigmoid(gates[:, 1 * H:2 * H])
        g = jnp.tanh(gates[:, 2 * H:3 * H])
        o = jax.nn.sigmoid(gates[:, 3 * H:4 * H])
        c_new = f * c + i * g
        h_new = o * jnp.tanh(c_new)
        return (h_new, c_new), h_new

    (h_last, _), _ = jax.lax.scan(step, (h0[0], c0[0]), x_sbi)
    return h_last @ weight + bias


if __name__ == "__main__":
    # Small synthetic config (mirrors args.input_size / args.hidden_size).
    B, S, I, H = 4, 8, 16, 32
    dtype = jnp.float32

    key = jax.random.PRNGKey(0)
    keys = jax.random.split(key, 9)
    bound = 1.0 / np.sqrt(H)

    # nn.LSTM parameters (single layer): W_ih (4H,I), W_hh (4H,H), biases (4H,)
    w_ih = jax.random.uniform(keys[0], (4 * H, I), dtype, -bound, bound)
    w_hh = jax.random.uniform(keys[1], (4 * H, H), dtype, -bound, bound)
    b_ih = jax.random.uniform(keys[2], (4 * H,), dtype, -bound, bound)
    b_hh = jax.random.uniform(keys[3], (4 * H,), dtype, -bound, bound)
    # nn.Parameter(torch.randn(...)) equivalents.
    weight = jax.random.normal(keys[4], (H, I), dtype)
    bias = jax.random.normal(keys[5], (I,), dtype)
    params = (w_ih, w_hh, b_ih, b_hh, weight, bias)

    # Inputs: x (B, S, I); hidden_and_cell = (h0, c0) each (1, B, H).
    x = jax.random.normal(keys[6], (B, S, I), dtype)
    h0 = jax.random.normal(keys[7], (1, B, H), dtype)
    c0 = jax.random.normal(keys[8], (1, B, H), dtype)

    ref = jax.block_until_ready(lstm_forward_ref((h0, c0), x, params))

    # f32 MXU path (numerical parity with the reference).
    out_f32 = jax.block_until_ready(lstm_forward((h0, c0), x, params))
    np.testing.assert_allclose(np.asarray(out_f32), np.asarray(ref),
                               rtol=1e-2, atol=1e-2)

    # bf16-operand MXU path (recommended at real sizes on v5e/v6e/v7x).
    out_bf16 = jax.block_until_ready(
        lstm_forward((h0, c0), x, params, mxu_dtype=jnp.bfloat16))
    np.testing.assert_allclose(np.asarray(out_bf16), np.asarray(ref),
                               rtol=1.5e-1, atol=1.5e-1)

    print("KERNEL_OK")
</pallas_src>

<mosaic_0001>
module attributes {stable_mosaic.version = 11 : i64} {
  func.func @_lstm_kernel(%arg0: i32, %arg1: memref<8x8x16xf32, #tpu.memory_space<vmem>>, %arg2: memref<16x512xf32, #tpu.memory_space<vmem>>, %arg3: memref<128x512xf32, #tpu.memory_space<vmem>>, %arg4: memref<1x512xf32, #tpu.memory_space<vmem>>, %arg5: memref<128x128xf32, #tpu.memory_space<vmem>>, %arg6: memref<1x128xf32, #tpu.memory_space<vmem>>, %arg7: memref<8x128xf32, #tpu.memory_space<vmem>>, %arg8: memref<8x128xf32, #tpu.memory_space<vmem>>, %arg9: memref<8x128xf32, #tpu.memory_space<vmem>>, %arg10: memref<8x8x512xf32, #tpu.memory_space<vmem>>) attributes {dimension_semantics = [#tpu.dimension_semantics<parallel>], iteration_bounds = array<i64: 1>, scalar_prefetch = 0 : i64, scratch_operands = 1 : i64, tpu.core_type = #tpu.core_type<tc>, window_params = [{transform_indices = @transform_0, window_bounds = array<i64: 8, 8, 16>}, {pipeline_mode = #tpu.pipeline_mode<synchronous>, transform_indices = @transform_1, window_bounds = array<i64: 16, 512>}, {pipeline_mode = #tpu.pipeline_mode<synchronous>, transform_indices = @transform_2, window_bounds = array<i64: 128, 512>}, {pipeline_mode = #tpu.pipeline_mode<synchronous>, transform_indices = @transform_3, window_bounds = array<i64: 1, 512>}, {pipeline_mode = #tpu.pipeline_mode<synchronous>, transform_indices = @transform_4, window_bounds = array<i64: 128, 128>}, {pipeline_mode = #tpu.pipeline_mode<synchronous>, transform_indices = @transform_5, window_bounds = array<i64: 1, 128>}, {transform_indices = @transform_6, window_bounds = array<i64: 8, 128>}, {transform_indices = @transform_7, window_bounds = array<i64: 8, 128>}, {transform_indices = @transform_8, window_bounds = array<i64: 8, 128>}]} {
    %c0 = arith.constant 0 : index
    %c0_0 = arith.constant 0 : index
    %c0_1 = arith.constant 0 : index
    %0 = vector.load %arg1[%c0, %c0_0, %c0_1] : memref<8x8x16xf32, #tpu.memory_space<vmem>>, vector<8x8x16xf32>
    %1 = vector.shape_cast %0 : vector<8x8x16xf32> to vector<64x16xf32>
    %c0_2 = arith.constant 0 : index
    %c0_3 = arith.constant 0 : index
    %2 = vector.load %arg2[%c0_2, %c0_3] : memref<16x512xf32, #tpu.memory_space<vmem>>, vector<16x512xf32>
    %cst = arith.constant dense<0.000000e+00> : vector<64x512xf32>
    %3 = tpu.matmul %1, %2, %cst {dimension_numbers = #tpu.dot_dimension_numbers<[1], [0], [0], [1], [0, 0, 1, 1], [], []>} : vector<64x16xf32>, vector<16x512xf32>, vector<64x512xf32> -> vector<64x512xf32>
    %c0_4 = arith.constant 0 : index
    %c0_5 = arith.constant 0 : index
    %4 = vector.load %arg4[%c0_4, %c0_5] : memref<1x512xf32, #tpu.memory_space<vmem>>, vector<1x512xf32>
    %5 = vector.broadcast %4 : vector<1x512xf32> to vector<64x512xf32>
    %6 = arith.addf %3, %5 : vector<64x512xf32>
    %7 = vector.shape_cast %6 : vector<64x512xf32> to vector<8x8x512xf32>
    %c0_6 = arith.constant 0 : index
    %c0_7 = arith.constant 0 : index
    %c0_8 = arith.constant 0 : index
    %8 = vector.load %arg10[%c0_6, %c0_7, %c0_8] : memref<8x8x512xf32, #tpu.memory_space<vmem>>, vector<8x8x512xf32>
    tpu.vector_store %arg10[%c0_6, %c0_7, %c0_8], %7 {strides = array<i32>} : memref<8x8x512xf32, #tpu.memory_space<vmem>>, vector<8x8x512xf32>,
    %c0_9 = arith.constant 0 : index
    %c0_10 = arith.constant 0 : index
    %9 = vector.load %arg7[%c0_9, %c0_10] : memref<8x128xf32, #tpu.memory_space<vmem>>, vector<8x128xf32>
    %c0_11 = arith.constant 0 : index
    %c0_12 = arith.constant 0 : index
    %10 = vector.load %arg8[%c0_11, %c0_12] : memref<8x128xf32, #tpu.memory_space<vmem>>, vector<8x128xf32>
    %c0_i32 = arith.constant 0 : i32
    %11 = arith.index_cast %c0_i32 : i32 to index
    %c0_13 = arith.constant 0 : index
    %c0_14 = arith.constant 0 : index
    %12 = vector.load %arg10[%11, %c0_13, %c0_14] : memref<8x8x512xf32, #tpu.memory_space<vmem>>, vector<1x8x512xf32>
    %13 = vector.shape_cast %12 : vector<1x8x512xf32> to vector<8x512xf32>
    %c0_15 = arith.constant 0 : index
    %c0_16 = arith.constant 0 : index
    %14 = vector.load %arg3[%c0_15, %c0_16] : memref<128x512xf32, #tpu.memory_space<vmem>>, vector<128x512xf32>
    %cst_17 = arith.constant dense<0.000000e+00> : vector<8x512xf32>
    %15 = tpu.matmul %9, %14, %cst_17 {dimension_numbers = #tpu.dot_dimension_numbers<[1], [0], [0], [1], [0, 0, 1, 1], [], []>} : vector<8x128xf32>, vector<128x512xf32>, vector<8x512xf32> -> vector<8x512xf32>
    %16 = arith.addf %13, %15 : vector<8x512xf32>
    %17 = vector.extract_strided_slice %16 {offsets = [0, 0], sizes = [8, 128], strides = [1, 1]} : vector<8x512xf32> to vector<8x128xf32>
    %cst_18 = arith.constant 5.000000e-01 : f32
    %18 = vector.broadcast %cst_18 : f32 to vector<8x128xf32>
    %19 = arith.mulf %18, %17 : vector<8x128xf32>
    %20 = math.tanh %19 : vector<8x128xf32>
    %cst_19 = arith.constant 5.000000e-01 : f32
    %21 = vector.broadcast %cst_19 : f32 to vector<8x128xf32>
    %22 = arith.mulf %21, %20 : vector<8x128xf32>
    %cst_20 = arith.constant 5.000000e-01 : f32
    %23 = vector.broadcast %cst_20 : f32 to vector<8x128xf32>
    %24 = arith.addf %22, %23 : vector<8x128xf32>
    %25 = vector.extract_strided_slice %16 {offsets = [0, 128], sizes = [8, 128], strides = [1, 1]} : vector<8x512xf32> to vector<8x128xf32>
    %cst_21 = arith.constant 5.000000e-01 : f32
    %26 = vector.broadcast %cst_21 : f32 to vector<8x128xf32>
    %27 = arith.mulf %26, %25 : vector<8x128xf32>
    %28 = math.tanh %27 : vector<8x128xf32>
    %cst_22 = arith.constant 5.000000e-01 : f32
    %29 = vector.broadcast %cst_22 : f32 to vector<8x128xf32>
    %30 = arith.mulf %29, %28 : vector<8x128xf32>
    %cst_23 = arith.constant 5.000000e-01 : f32
    %31 = vector.broadcast %cst_23 : f32 to vector<8x128xf32>
    %32 = arith.addf %30, %31 : vector<8x128xf32>
    %33 = vector.extract_strided_slice %16 {offsets = [0, 256], sizes = [8, 128], strides = [1, 1]} : vector<8x512xf32> to vector<8x128xf32>
    %34 = math.tanh %33 : vector<8x128xf32>
    %35 = vector.extract_strided_slice %16 {offsets = [0, 384], sizes = [8, 128], strides = [1, 1]} : vector<8x512xf32> to vector<8x128xf32>
    %cst_24 = arith.constant 5.000000e-01 : f32
    %36 = vector.broadcast %cst_24 : f32 to vector<8x128xf32>
    %37 = arith.mulf %36, %35 : vector<8x128xf32>
    %38 = math.tanh %37 : vector<8x128xf32>
    %cst_25 = arith.constant 5.000000e-01 : f32
    %39 = vector.broadcast %cst_25 : f32 to vector<8x128xf32>
    %40 = arith.mulf %39, %38 : vector<8x128xf32>
    %cst_26 = arith.constant 5.000000e-01 : f32
    %41 = vector.broadcast %cst_26 : f32 to vector<8x128xf32>
    %42 = arith.addf %40, %41 : vector<8x128xf32>
    %43 = arith.mulf %32, %10 : vector<8x128xf32>
    %44 = arith.mulf %24, %34 : vector<8x128xf32>
    %45 = arith.addf %43, %44 : vector<8x128xf32>
    %46 = math.tanh %45 : vector<8x128xf32>
    %47 = arith.mulf %42, %46 : vector<8x128xf32>
    %c1_i32 = arith.constant 1 : i32
    %48 = arith.index_cast %c1_i32 : i32 to index
    %c0_27 = arith.constant 0 : index
    %c0_28 = arith.constant 0 : index
    %49 = vector.load %arg10[%48, %c0_27, %c0_28] : memref<8x8x512xf32, #tpu.memory_space<vmem>>, vector<1x8x512xf32>
    %50 = vector.shape_cast %49 : vector<1x8x512xf32> to vector<8x512xf32>
    %c0_29 = arith.constant 0 : index
    %c0_30 = arith.constant 0 : index
    %51 = vector.load %arg3[%c0_29, %c0_30] : memref<128x512xf32, #tpu.memory_space<vmem>>, vector<128x512xf32>
    %cst_31 = arith.constant dense<0.000000e+00> : vector<8x512xf32>
    %52 = tpu.matmul %47, %51, %cst_31 {dimension_numbers = #tpu.dot_dimension_numbers<[1], [0], [0], [1], [0, 0, 1, 1], [], []>} : vector<8x128xf32>, vector<128x512xf32>, vector<8x512xf32> -> vector<8x512xf32>
    %53 = arith.addf %50, %52 : vector<8x512xf32>
    %54 = vector.extract_strided_slice %53 {offsets = [0, 0], sizes = [8, 128], strides = [1, 1]} : vector<8x512xf32> to vector<8x128xf32>
    %cst_32 = arith.constant 5.000000e-01 : f32
    %55 = vector.broadcast %cst_32 : f32 to vector<8x128xf32>
    %56 = arith.mulf %55, %54 : vector<8x128xf32>
    %57 = math.tanh %56 : vector<8x128xf32>
    %cst_33 = arith.constant 5.000000e-01 : f32
    %58 = vector.broadcast %cst_33 : f32 to vector<8x128xf32>
    %59 = arith.mulf %58, %57 : vector<8x128xf32>
    %cst_34 = arith.constant 5.000000e-01 : f32
    %60 = vector.broadcast %cst_34 : f32 to vector<8x128xf32>
    %61 = arith.addf %59, %60 : vector<8x128xf32>
    %62 = vector.extract_strided_slice %53 {offsets = [0, 128], sizes = [8, 128], strides = [1, 1]} : vector<8x512xf32> to vector<8x128xf32>
    %cst_35 = arith.constant 5.000000e-01 : f32
    %63 = vector.broadcast %cst_35 : f32 to vector<8x128xf32>
    %64 = arith.mulf %63, %62 : vector<8x128xf32>
    %65 = math.tanh %64 : vector<8x128xf32>
    %cst_36 = arith.constant 5.000000e-01 : f32
    %66 = vector.broadcast %cst_36 : f32 to vector<8x128xf32>
    %67 = arith.mulf %66, %65 : vector<8x128xf32>
    %cst_37 = arith.constant 5.000000e-01 : f32
    %68 = vector.broadcast %cst_37 : f32 to vector<8x128xf32>
    %69 = arith.addf %67, %68 : vector<8x128xf32>
    %70 = vector.extract_strided_slice %53 {offsets = [0, 256], sizes = [8, 128], strides = [1, 1]} : vector<8x512xf32> to vector<8x128xf32>
    %71 = math.tanh %70 : vector<8x128xf32>
    %72 = vector.extract_strided_slice %53 {offsets = [0, 384], sizes = [8, 128], strides = [1, 1]} : vector<8x512xf32> to vector<8x128xf32>
    %cst_38 = arith.constant 5.000000e-01 : f32
    %73 = vector.broadcast %cst_38 : f32 to vector<8x128xf32>
    %74 = arith.mulf %73, %72 : vector<8x128xf32>
    %75 = math.tanh %74 : vector<8x128xf32>
    %cst_39 = arith.constant 5.000000e-01 : f32
    %76 = vector.broadcast %cst_39 : f32 to vector<8x128xf32>
    %77 = arith.mulf %76, %75 : vector<8x128xf32>
    %cst_40 = arith.constant 5.000000e-01 : f32
    %78 = vector.broadcast %cst_40 : f32 to vector<8x128xf32>
    %79 = arith.addf %77, %78 : vector<8x128xf32>
    %80 = arith.mulf %69, %45 : vector<8x128xf32>
    %81 = arith.mulf %61, %71 : vector<8x128xf32>
    %82 = arith.addf %80, %81 : vector<8x128xf32>
    %83 = math.tanh %82 : vector<8x128xf32>
    %84 = arith.mulf %79, %83 : vector<8x128xf32>
    %c2_i32 = arith.constant 2 : i32
    %85 = arith.index_cast %c2_i32 : i32 to index
    %c0_41 = arith.constant 0 : index
    %c0_42 = arith.constant 0 : index
    %86 = vector.load %arg10[%85, %c0_41, %c0_42] : memref<8x8x512xf32, #tpu.memory_space<vmem>>, vector<1x8x512xf32>
    %87 = vector.shape_cast %86 : vector<1x8x512xf32> to vector<8x512xf32>
    %c0_43 = arith.constant 0 : index
    %c0_44 = arith.constant 0 : index
    %88 = vector.load %arg3[%c0_43, %c0_44] : memref<128x512xf32, #tpu.memory_space<vmem>>, vector<128x512xf32>
    %cst_45 = arith.constant dense<0.000000e+00> : vector<8x512xf32>
    %89 = tpu.matmul %84, %88, %cst_45 {dimension_numbers = #tpu.dot_dimension_numbers<[1], [0], [0], [1], [0, 0, 1, 1], [], []>} : vector<8x128xf32>, vector<128x512xf32>, vector<8x512xf32> -> vector<8x512xf32>
    %90 = arith.addf %87, %89 : vector<8x512xf32>
    %91 = vector.extract_strided_slice %90 {offsets = [0, 0], sizes = [8, 128], strides = [1, 1]} : vector<8x512xf32> to vector<8x128xf32>
    %cst_46 = arith.constant 5.000000e-01 : f32
    %92 = vector.broadcast %cst_46 : f32 to vector<8x128xf32>
    %93 = arith.mulf %92, %91 : vector<8x128xf32>
    %94 = math.tanh %93 : vector<8x128xf32>
    %cst_47 = arith.constant 5.000000e-01 : f32
    %95 = vector.broadcast %cst_47 : f32 to vector<8x128xf32>
    %96 = arith.mulf %95, %94 : vector<8x128xf32>
    %cst_48 = arith.constant 5.000000e-01 : f32
    %97 = vector.broadcast %cst_48 : f32 to vector<8x128xf32>
    %98 = arith.addf %96, %97 : vector<8x128xf32>
    %99 = vector.extract_strided_slice %90 {offsets = [0, 128], sizes = [8, 128], strides = [1, 1]} : vector<8x512xf32> to vector<8x128xf32>
    %cst_49 = arith.constant 5.000000e-01 : f32
    %100 = vector.broadcast %cst_49 : f32 to vector<8x128xf32>
    %101 = arith.mulf %100, %99 : vector<8x128xf32>
    %102 = math.tanh %101 : vector<8x128xf32>
    %cst_50 = arith.constant 5.000000e-01 : f32
    %103 = vector.broadcast %cst_50 : f32 to vector<8x128xf32>
    %104 = arith.mulf %103, %102 : vector<8x128xf32>
    %cst_51 = arith.constant 5.000000e-01 : f32
    %105 = vector.broadcast %cst_51 : f32 to vector<8x128xf32>
    %106 = arith.addf %104, %105 : vector<8x128xf32>
    %107 = vector.extract_strided_slice %90 {offsets = [0, 256], sizes = [8, 128], strides = [1, 1]} : vector<8x512xf32> to vector<8x128xf32>
    %108 = math.tanh %107 : vector<8x128xf32>
    %109 = vector.extract_strided_slice %90 {offsets = [0, 384], sizes = [8, 128], strides = [1, 1]} : vector<8x512xf32> to vector<8x128xf32>
    %cst_52 = arith.constant 5.000000e-01 : f32
    %110 = vector.broadcast %cst_52 : f32 to vector<8x128xf32>
    %111 = arith.mulf %110, %109 : vector<8x128xf32>
    %112 = math.tanh %111 : vector<8x128xf32>
    %cst_53 = arith.constant 5.000000e-01 : f32
    %113 = vector.broadcast %cst_53 : f32 to vector<8x128xf32>
    %114 = arith.mulf %113, %112 : vector<8x128xf32>
    %cst_54 = arith.constant 5.000000e-01 : f32
    %115 = vector.broadcast %cst_54 : f32 to vector<8x128xf32>
    %116 = arith.addf %114, %115 : vector<8x128xf32>
    %117 = arith.mulf %106, %82 : vector<8x128xf32>
    %118 = arith.mulf %98, %108 : vector<8x128xf32>
    %119 = arith.addf %117, %118 : vector<8x128xf32>
    %120 = math.tanh %119 : vector<8x128xf32>
    %121 = arith.mulf %116, %120 : vector<8x128xf32>
    %c3_i32 = arith.constant 3 : i32
    %122 = arith.index_cast %c3_i32 : i32 to index
    %c0_55 = arith.constant 0 : index
    %c0_56 = arith.constant 0 : index
    %123 = vector.load %arg10[%122, %c0_55, %c0_56] : memref<8x8x512xf32, #tpu.memory_space<vmem>>, vector<1x8x512xf32>
    %124 = vector.shape_cast %123 : vector<1x8x512xf32> to vector<8x512xf32>
    %c0_57 = arith.constant 0 : index
    %c0_58 = arith.constant 0 : index
    %125 = vector.load %arg3[%c0_57, %c0_58] : memref<128x512xf32, #tpu.memory_space<vmem>>, vector<128x512xf32>
    %cst_59 = arith.constant dense<0.000000e+00> : vector<8x512xf32>
    %126 = tpu.matmul %121, %125, %cst_59 {dimension_numbers = #tpu.dot_dimension_numbers<[1], [0], [0], [1], [0, 0, 1, 1], [], []>} : vector<8x128xf32>, vector<128x512xf32>, vector<8x512xf32> -> vector<8x512xf32>
    %127 = arith.addf %124, %126 : vector<8x512xf32>
    %128 = vector.extract_strided_slice %127 {offsets = [0, 0], sizes = [8, 128], strides = [1, 1]} : vector<8x512xf32> to vector<8x128xf32>
    %cst_60 = arith.constant 5.000000e-01 : f32
    %129 = vector.broadcast %cst_60 : f32 to vector<8x128xf32>
    %130 = arith.mulf %129, %128 : vector<8x128xf32>
    %131 = math.tanh %130 : vector<8x128xf32>
    %cst_61 = arith.constant 5.000000e-01 : f32
    %132 = vector.broadcast %cst_61 : f32 to vector<8x128xf32>
    %133 = arith.mulf %132, %131 : vector<8x128xf32>
    %cst_62 = arith.constant 5.000000e-01 : f32
    %134 = vector.broadcast %cst_62 : f32 to vector<8x128xf32>
    %135 = arith.addf %133, %134 : vector<8x128xf32>
    %136 = vector.extract_strided_slice %127 {offsets = [0, 128], sizes = [8, 128], strides = [1, 1]} : vector<8x512xf32> to vector<8x128xf32>
    %cst_63 = arith.constant 5.000000e-01 : f32
    %137 = vector.broadcast %cst_63 : f32 to vector<8x128xf32>
    %138 = arith.mulf %137, %136 : vector<8x128xf32>
    %139 = math.tanh %138 : vector<8x128xf32>
    %cst_64 = arith.constant 5.000000e-01 : f32
    %140 = vector.broadcast %cst_64 : f32 to vector<8x128xf32>
    %141 = arith.mulf %140, %139 : vector<8x128xf32>
    %cst_65 = arith.constant 5.000000e-01 : f32
    %142 = vector.broadcast %cst_65 : f32 to vector<8x128xf32>
    %143 = arith.addf %141, %142 : vector<8x128xf32>
    %144 = vector.extract_strided_slice %127 {offsets = [0, 256], sizes = [8, 128], strides = [1, 1]} : vector<8x512xf32> to vector<8x128xf32>
    %145 = math.tanh %144 : vector<8x128xf32>
    %146 = vector.extract_strided_slice %127 {offsets = [0, 384], sizes = [8, 128], strides = [1, 1]} : vector<8x512xf32> to vector<8x128xf32>
    %cst_66 = arith.constant 5.000000e-01 : f32
    %147 = vector.broadcast %cst_66 : f32 to vector<8x128xf32>
    %148 = arith.mulf %147, %146 : vector<8x128xf32>
    %149 = math.tanh %148 : vector<8x128xf32>
    %cst_67 = arith.constant 5.000000e-01 : f32
    %150 = vector.broadcast %cst_67 : f32 to vector<8x128xf32>
    %151 = arith.mulf %150, %149 : vector<8x128xf32>
    %cst_68 = arith.constant 5.000000e-01 : f32
    %152 = vector.broadcast %cst_68 : f32 to vector<8x128xf32>
    %153 = arith.addf %151, %152 : vector<8x128xf32>
    %154 = arith.mulf %143, %119 : vector<8x128xf32>
    %155 = arith.mulf %135, %145 : vector<8x128xf32>
    %156 = arith.addf %154, %155 : vector<8x128xf32>
    %157 = math.tanh %156 : vector<8x128xf32>
    %158 = arith.mulf %153, %157 : vector<8x128xf32>
    %c4_i32 = arith.constant 4 : i32
    %159 = arith.index_cast %c4_i32 : i32 to index
    %c0_69 = arith.constant 0 : index
    %c0_70 = arith.constant 0 : index
    %160 = vector.load %arg10[%159, %c0_69, %c0_70] : memref<8x8x512xf32, #tpu.memory_space<vmem>>, vector<1x8x512xf32>
    %161 = vector.shape_cast %160 : vector<1x8x512xf32> to vector<8x512xf32>
    %c0_71 = arith.constant 0 : index
    %c0_72 = arith.constant 0 : index
    %162 = vector.load %arg3[%c0_71, %c0_72] : memref<128x512xf32, #tpu.memory_space<vmem>>, vector<128x512xf32>
    %cst_73 = arith.constant dense<0.000000e+00> : vector<8x512xf32>
    %163 = tpu.matmul %158, %162, %cst_73 {dimension_numbers = #tpu.dot_dimension_numbers<[1], [0], [0], [1], [0, 0, 1, 1], [], []>} : vector<8x128xf32>, vector<128x512xf32>, vector<8x512xf32> -> vector<8x512xf32>
    %164 = arith.addf %161, %163 : vector<8x512xf32>
    %165 = vector.extract_strided_slice %164 {offsets = [0, 0], sizes = [8, 128], strides = [1, 1]} : vector<8x512xf32> to vector<8x128xf32>
    %cst_74 = arith.constant 5.000000e-01 : f32
    %166 = vector.broadcast %cst_74 : f32 to vector<8x128xf32>
    %167 = arith.mulf %166, %165 : vector<8x128xf32>
    %168 = math.tanh %167 : vector<8x128xf32>
    %cst_75 = arith.constant 5.000000e-01 : f32
    %169 = vector.broadcast %cst_75 : f32 to vector<8x128xf32>
    %170 = arith.mulf %169, %168 : vector<8x128xf32>
    %cst_76 = arith.constant 5.000000e-01 : f32
    %171 = vector.broadcast %cst_76 : f32 to vector<8x128xf32>
    %172 = arith.addf %170, %171 : vector<8x128xf32>
    %173 = vector.extract_strided_slice %164 {offsets = [0, 128], sizes = [8, 128], strides = [1, 1]} : vector<8x512xf32> to vector<8x128xf32>
    %cst_77 = arith.constant 5.000000e-01 : f32
    %174 = vector.broadcast %cst_77 : f32 to vector<8x128xf32>
    %175 = arith.mulf %174, %173 : vector<8x128xf32>
    %176 = math.tanh %175 : vector<8x128xf32>
    %cst_78 = arith.constant 5.000000e-01 : f32
    %177 = vector.broadcast %cst_78 : f32 to vector<8x128xf32>
    %178 = arith.mulf %177, %176 : vector<8x128xf32>
    %cst_79 = arith.constant 5.000000e-01 : f32
    %179 = vector.broadcast %cst_79 : f32 to vector<8x128xf32>
    %180 = arith.addf %178, %179 : vector<8x128xf32>
    %181 = vector.extract_strided_slice %164 {offsets = [0, 256], sizes = [8, 128], strides = [1, 1]} : vector<8x512xf32> to vector<8x128xf32>
    %182 = math.tanh %181 : vector<8x128xf32>
    %183 = vector.extract_strided_slice %164 {offsets = [0, 384], sizes = [8, 128], strides = [1, 1]} : vector<8x512xf32> to vector<8x128xf32>
    %cst_80 = arith.constant 5.000000e-01 : f32
    %184 = vector.broadcast %cst_80 : f32 to vector<8x128xf32>
    %185 = arith.mulf %184, %183 : vector<8x128xf32>
    %186 = math.tanh %185 : vector<8x128xf32>
    %cst_81 = arith.constant 5.000000e-01 : f32
    %187 = vector.broadcast %cst_81 : f32 to vector<8x128xf32>
    %188 = arith.mulf %187, %186 : vector<8x128xf32>
    %cst_82 = arith.constant 5.000000e-01 : f32
    %189 = vector.broadcast %cst_82 : f32 to vector<8x128xf32>
    %190 = arith.addf %188, %189 : vector<8x128xf32>
    %191 = arith.mulf %180, %156 : vector<8x128xf32>
    %192 = arith.mulf %172, %182 : vector<8x128xf32>
    %193 = arith.addf %191, %192 : vector<8x128xf32>
    %194 = math.tanh %193 : vector<8x128xf32>
    %195 = arith.mulf %190, %194 : vector<8x128xf32>
    %c5_i32 = arith.constant 5 : i32
    %196 = arith.index_cast %c5_i32 : i32 to index
    %c0_83 = arith.constant 0 : index
    %c0_84 = arith.constant 0 : index
    %197 = vector.load %arg10[%196, %c0_83, %c0_84] : memref<8x8x512xf32, #tpu.memory_space<vmem>>, vector<1x8x512xf32>
    %198 = vector.shape_cast %197 : vector<1x8x512xf32> to vector<8x512xf32>
    %c0_85 = arith.constant 0 : index
    %c0_86 = arith.constant 0 : index
    %199 = vector.load %arg3[%c0_85, %c0_86] : memref<128x512xf32, #tpu.memory_space<vmem>>, vector<128x512xf32>
    %cst_87 = arith.constant dense<0.000000e+00> : vector<8x512xf32>
    %200 = tpu.matmul %195, %199, %cst_87 {dimension_numbers = #tpu.dot_dimension_numbers<[1], [0], [0], [1], [0, 0, 1, 1], [], []>} : vector<8x128xf32>, vector<128x512xf32>, vector<8x512xf32> -> vector<8x512xf32>
    %201 = arith.addf %198, %200 : vector<8x512xf32>
    %202 = vector.extract_strided_slice %201 {offsets = [0, 0], sizes = [8, 128], strides = [1, 1]} : vector<8x512xf32> to vector<8x128xf32>
    %cst_88 = arith.constant 5.000000e-01 : f32
    %203 = vector.broadcast %cst_88 : f32 to vector<8x128xf32>
    %204 = arith.mulf %203, %202 : vector<8x128xf32>
    %205 = math.tanh %204 : vector<8x128xf32>
    %cst_89 = arith.constant 5.000000e-01 : f32
    %206 = vector.broadcast %cst_89 : f32 to vector<8x128xf32>
    %207 = arith.mulf %206, %205 : vector<8x128xf32>
    %cst_90 = arith.constant 5.000000e-01 : f32
    %208 = vector.broadcast %cst_90 : f32 to vector<8x128xf32>
    %209 = arith.addf %207, %208 : vector<8x128xf32>
    %210 = vector.extract_strided_slice %201 {offsets = [0, 128], sizes = [8, 128], strides = [1, 1]} : vector<8x512xf32> to vector<8x128xf32>
    %cst_91 = arith.constant 5.000000e-01 : f32
    %211 = vector.broadcast %cst_91 : f32 to vector<8x128xf32>
    %212 = arith.mulf %211, %210 : vector<8x128xf32>
    %213 = math.tanh %212 : vector<8x128xf32>
    %cst_92 = arith.constant 5.000000e-01 : f32
    %214 = vector.broadcast %cst_92 : f32 to vector<8x128xf32>
    %215 = arith.mulf %214, %213 : vector<8x128xf32>
    %cst_93 = arith.constant 5.000000e-01 : f32
    %216 = vector.broadcast %cst_93 : f32 to vector<8x128xf32>
    %217 = arith.addf %215, %216 : vector<8x128xf32>
    %218 = vector.extract_strided_slice %201 {offsets = [0, 256], sizes = [8, 128], strides = [1, 1]} : vector<8x512xf32> to vector<8x128xf32>
    %219 = math.tanh %218 : vector<8x128xf32>
    %220 = vector.extract_strided_slice %201 {offsets = [0, 384], sizes = [8, 128], strides = [1, 1]} : vector<8x512xf32> to vector<8x128xf32>
    %cst_94 = arith.constant 5.000000e-01 : f32
    %221 = vector.broadcast %cst_94 : f32 to vector<8x128xf32>
    %222 = arith.mulf %221, %220 : vector<8x128xf32>
    %223 = math.tanh %222 : vector<8x128xf32>
    %cst_95 = arith.constant 5.000000e-01 : f32
    %224 = vector.broadcast %cst_95 : f32 to vector<8x128xf32>
    %225 = arith.mulf %224, %223 : vector<8x128xf32>
    %cst_96 = arith.constant 5.000000e-01 : f32
    %226 = vector.broadcast %cst_96 : f32 to vector<8x128xf32>
    %227 = arith.addf %225, %226 : vector<8x128xf32>
    %228 = arith.mulf %217, %193 : vector<8x128xf32>
    %229 = arith.mulf %209, %219 : vector<8x128xf32>
    %230 = arith.addf %228, %229 : vector<8x128xf32>
    %231 = math.tanh %230 : vector<8x128xf32>
    %232 = arith.mulf %227, %231 : vector<8x128xf32>
    %c6_i32 = arith.constant 6 : i32
    %233 = arith.index_cast %c6_i32 : i32 to index
    %c0_97 = arith.constant 0 : index
    %c0_98 = arith.constant 0 : index
    %234 = vector.load %arg10[%233, %c0_97, %c0_98] : memref<8x8x512xf32, #tpu.memory_space<vmem>>, vector<1x8x512xf32>
    %235 = vector.shape_cast %234 : vector<1x8x512xf32> to vector<8x512xf32>
    %c0_99 = arith.constant 0 : index
    %c0_100 = arith.constant 0 : index
    %236 = vector.load %arg3[%c0_99, %c0_100] : memref<128x512xf32, #tpu.memory_space<vmem>>, vector<128x512xf32>
    %cst_101 = arith.constant dense<0.000000e+00> : vector<8x512xf32>
    %237 = tpu.matmul %232, %236, %cst_101 {dimension_numbers = #tpu.dot_dimension_numbers<[1], [0], [0], [1], [0, 0, 1, 1], [], []>} : vector<8x128xf32>, vector<128x512xf32>, vector<8x512xf32> -> vector<8x512xf32>
    %238 = arith.addf %235, %237 : vector<8x512xf32>
    %239 = vector.extract_strided_slice %238 {offsets = [0, 0], sizes = [8, 128], strides = [1, 1]} : vector<8x512xf32> to vector<8x128xf32>
    %cst_102 = arith.constant 5.000000e-01 : f32
    %240 = vector.broadcast %cst_102 : f32 to vector<8x128xf32>
    %241 = arith.mulf %240, %239 : vector<8x128xf32>
    %242 = math.tanh %241 : vector<8x128xf32>
    %cst_103 = arith.constant 5.000000e-01 : f32
    %243 = vector.broadcast %cst_103 : f32 to vector<8x128xf32>
    %244 = arith.mulf %243, %242 : vector<8x128xf32>
    %cst_104 = arith.constant 5.000000e-01 : f32
    %245 = vector.broadcast %cst_104 : f32 to vector<8x128xf32>
    %246 = arith.addf %244, %245 : vector<8x128xf32>
    %247 = vector.extract_strided_slice %238 {offsets = [0, 128], sizes = [8, 128], strides = [1, 1]} : vector<8x512xf32> to vector<8x128xf32>
    %cst_105 = arith.constant 5.000000e-01 : f32
    %248 = vector.broadcast %cst_105 : f32 to vector<8x128xf32>
    %249 = arith.mulf %248, %247 : vector<8x128xf32>
    %250 = math.tanh %249 : vector<8x128xf32>
    %cst_106 = arith.constant 5.000000e-01 : f32
    %251 = vector.broadcast %cst_106 : f32 to vector<8x128xf32>
    %252 = arith.mulf %251, %250 : vector<8x128xf32>
    %cst_107 = arith.constant 5.000000e-01 : f32
    %253 = vector.broadcast %cst_107 : f32 to vector<8x128xf32>
    %254 = arith.addf %252, %253 : vector<8x128xf32>
    %255 = vector.extract_strided_slice %238 {offsets = [0, 256], sizes = [8, 128], strides = [1, 1]} : vector<8x512xf32> to vector<8x128xf32>
    %256 = math.tanh %255 : vector<8x128xf32>
    %257 = vector.extract_strided_slice %238 {offsets = [0, 384], sizes = [8, 128], strides = [1, 1]} : vector<8x512xf32> to vector<8x128xf32>
    %cst_108 = arith.constant 5.000000e-01 : f32
    %258 = vector.broadcast %cst_108 : f32 to vector<8x128xf32>
    %259 = arith.mulf %258, %257 : vector<8x128xf32>
    %260 = math.tanh %259 : vector<8x128xf32>
    %cst_109 = arith.constant 5.000000e-01 : f32
    %261 = vector.broadcast %cst_109 : f32 to vector<8x128xf32>
    %262 = arith.mulf %261, %260 : vector<8x128xf32>
    %cst_110 = arith.constant 5.000000e-01 : f32
    %263 = vector.broadcast %cst_110 : f32 to vector<8x128xf32>
    %264 = arith.addf %262, %263 : vector<8x128xf32>
    %265 = arith.mulf %254, %230 : vector<8x128xf32>
    %266 = arith.mulf %246, %256 : vector<8x128xf32>
    %267 = arith.addf %265, %266 : vector<8x128xf32>
    %268 = math.tanh %267 : vector<8x128xf32>
    %269 = arith.mulf %264, %268 : vector<8x128xf32>
    %c7_i32 = arith.constant 7 : i32
    %270 = arith.index_cast %c7_i32 : i32 to index
    %c0_111 = arith.constant 0 : index
    %c0_112 = arith.constant 0 : index
    %271 = vector.load %arg10[%270, %c0_111, %c0_112] : memref<8x8x512xf32, #tpu.memory_space<vmem>>, vector<1x8x512xf32>
    %272 = vector.shape_cast %271 : vector<1x8x512xf32> to vector<8x512xf32>
    %c0_113 = arith.constant 0 : index
    %c0_114 = arith.constant 0 : index
    %273 = vector.load %arg3[%c0_113, %c0_114] : memref<128x512xf32, #tpu.memory_space<vmem>>, vector<128x512xf32>
    %cst_115 = arith.constant dense<0.000000e+00> : vector<8x512xf32>
    %274 = tpu.matmul %269, %273, %cst_115 {dimension_numbers = #tpu.dot_dimension_numbers<[1], [0], [0], [1], [0, 0, 1, 1], [], []>} : vector<8x128xf32>, vector<128x512xf32>, vector<8x512xf32> -> vector<8x512xf32>
    %275 = arith.addf %272, %274 : vector<8x512xf32>
    %276 = vector.extract_strided_slice %275 {offsets = [0, 0], sizes = [8, 128], strides = [1, 1]} : vector<8x512xf32> to vector<8x128xf32>
    %cst_116 = arith.constant 5.000000e-01 : f32
    %277 = vector.broadcast %cst_116 : f32 to vector<8x128xf32>
    %278 = arith.mulf %277, %276 : vector<8x128xf32>
    %279 = math.tanh %278 : vector<8x128xf32>
    %cst_117 = arith.constant 5.000000e-01 : f32
    %280 = vector.broadcast %cst_117 : f32 to vector<8x128xf32>
    %281 = arith.mulf %280, %279 : vector<8x128xf32>
    %cst_118 = arith.constant 5.000000e-01 : f32
    %282 = vector.broadcast %cst_118 : f32 to vector<8x128xf32>
    %283 = arith.addf %281, %282 : vector<8x128xf32>
    %284 = vector.extract_strided_slice %275 {offsets = [0, 128], sizes = [8, 128], strides = [1, 1]} : vector<8x512xf32> to vector<8x128xf32>
    %cst_119 = arith.constant 5.000000e-01 : f32
    %285 = vector.broadcast %cst_119 : f32 to vector<8x128xf32>
    %286 = arith.mulf %285, %284 : vector<8x128xf32>
    %287 = math.tanh %286 : vector<8x128xf32>
    %cst_120 = arith.constant 5.000000e-01 : f32
    %288 = vector.broadcast %cst_120 : f32 to vector<8x128xf32>
    %289 = arith.mulf %288, %287 : vector<8x128xf32>
    %cst_121 = arith.constant 5.000000e-01 : f32
    %290 = vector.broadcast %cst_121 : f32 to vector<8x128xf32>
    %291 = arith.addf %289, %290 : vector<8x128xf32>
    %292 = vector.extract_strided_slice %275 {offsets = [0, 256], sizes = [8, 128], strides = [1, 1]} : vector<8x512xf32> to vector<8x128xf32>
    %293 = math.tanh %292 : vector<8x128xf32>
    %294 = vector.extract_strided_slice %275 {offsets = [0, 384], sizes = [8, 128], strides = [1, 1]} : vector<8x512xf32> to vector<8x128xf32>
    %cst_122 = arith.constant 5.000000e-01 : f32
    %295 = vector.broadcast %cst_122 : f32 to vector<8x128xf32>
    %296 = arith.mulf %295, %294 : vector<8x128xf32>
    %297 = math.tanh %296 : vector<8x128xf32>
    %cst_123 = arith.constant 5.000000e-01 : f32
    %298 = vector.broadcast %cst_123 : f32 to vector<8x128xf32>
    %299 = arith.mulf %298, %297 : vector<8x128xf32>
    %cst_124 = arith.constant 5.000000e-01 : f32
    %300 = vector.broadcast %cst_124 : f32 to vector<8x128xf32>
    %301 = arith.addf %299, %300 : vector<8x128xf32>
    %302 = arith.mulf %291, %267 : vector<8x128xf32>
    %303 = arith.mulf %283, %293 : vector<8x128xf32>
    %304 = arith.addf %302, %303 : vector<8x128xf32>
    %305 = math.tanh %304 : vector<8x128xf32>
    %306 = arith.mulf %301, %305 : vector<8x128xf32>
    %c8_i32 = arith.constant 8 : i32
    %c0_125 = arith.constant 0 : index
    %c0_126 = arith.constant 0 : index
    %307 = vector.load %arg5[%c0_125, %c0_126] : memref<128x128xf32, #tpu.memory_space<vmem>>, vector<128x128xf32>
    %cst_127 = arith.constant dense<0.000000e+00> : vector<8x128xf32>
    %308 = tpu.matmul %306, %307, %cst_127 {dimension_numbers = #tpu.dot_dimension_numbers<[1], [0], [0], [1], [0, 0, 1, 1], [], []>} : vector<8x128xf32>, vector<128x128xf32>, vector<8x128xf32> -> vector<8x128xf32>
    %c0_128 = arith.constant 0 : index
    %c0_129 = arith.constant 0 : index
    %309 = vector.load %arg6[%c0_128, %c0_129] : memref<1x128xf32, #tpu.memory_space<vmem>>, vector<1x128xf32>
    %310 = vector.broadcast %309 : vector<1x128xf32> to vector<8x128xf32>
    %311 = arith.addf %308, %310 : vector<8x128xf32>
    %c0_130 = arith.constant 0 : index
    %c0_131 = arith.constant 0 : index
    %312 = vector.load %arg9[%c0_130, %c0_131] : memref<8x128xf32, #tpu.memory_space<vmem>>, vector<8x128xf32>
    tpu.vector_store %arg9[%c0_130, %c0_131], %311 {strides = array<i32>} : memref<8x128xf32, #tpu.memory_space<vmem>>, vector<8x128xf32>,
    return
  }
  func.func @transform_0(%arg0: i32) -> (i32, i32, i32) {
    %c0_i32 = arith.constant 0 : i32
    %c0_i32_0 = arith.constant 0 : i32
    %c0_i32_1 = arith.constant 0 : i32
    return %c0_i32, %arg0, %c0_i32_0 : i32, i32, i32
  }
  func.func @transform_1(%arg0: i32) -> (i32, i32) {
    %c0_i32 = arith.constant 0 : i32
    %c0_i32_0 = arith.constant 0 : i32
    %c0_i32_1 = arith.constant 0 : i32
    return %c0_i32, %c0_i32_0 : i32, i32
  }
  func.func @transform_2(%arg0: i32) -> (i32, i32) {
    %c0_i32 = arith.constant 0 : i32
    %c0_i32_0 = arith.constant 0 : i32
    %c0_i32_1 = arith.constant 0 : i32
    return %c0_i32, %c0_i32_0 : i32, i32
  }
  func.func @transform_3(%arg0: i32) -> (i32, i32) {
    %c0_i32 = arith.constant 0 : i32
    %c0_i32_0 = arith.constant 0 : i32
    %c0_i32_1 = arith.constant 0 : i32
    return %c0_i32, %c0_i32_0 : i32, i32
  }
  func.func @transform_4(%arg0: i32) -> (i32, i32) {
    %c0_i32 = arith.constant 0 : i32
    %c0_i32_0 = arith.constant 0 : i32
    %c0_i32_1 = arith.constant 0 : i32
    return %c0_i32, %c0_i32_0 : i32, i32
  }
  func.func @transform_5(%arg0: i32) -> (i32, i32) {
    %c0_i32 = arith.constant 0 : i32
    %c0_i32_0 = arith.constant 0 : i32
    %c0_i32_1 = arith.constant 0 : i32
    return %c0_i32, %c0_i32_0 : i32, i32
  }
  func.func @transform_6(%arg0: i32) -> (i32, i32) {
    %c0_i32 = arith.constant 0 : i32
    %c0_i32_0 = arith.constant 0 : i32
    return %arg0, %c0_i32 : i32, i32
  }
  func.func @transform_7(%arg0: i32) -> (i32, i32) {
    %c0_i32 = arith.constant 0 : i32
    %c0_i32_0 = arith.constant 0 : i32
    return %arg0, %c0_i32 : i32, i32
  }
  func.func @transform_8(%arg0: i32) -> (i32, i32) {
    %c0_i32 = arith.constant 0 : i32
    %c0_i32_0 = arith.constant 0 : i32
    return %arg0, %c0_i32 : i32, i32
  }
}

</mosaic_0001>

<llo_original>
// kernel: lstm_forward.1
$region0: #{lstm_forward.1}
  #allocation0 [shape = 'u32[]', space=smem, size = 0x4, offset = 0x4, fixed_abs, tag = 'smem constant byte address 0x4 - core index']
  #allocation1 [shape = 'u32[144,128]{1,0:T(1,128)}', space=vmem, size = 0x12000, scoped, tag = 'internal scratch']
  #allocation2 [shape = 'f32[8,8,512]{2,1,0:T(8,128)}', space=vmem, size = 0x20000, scoped, tag = 'scratch operand']
  %s0 = inlined_call_operand.vmem [shape: f32[8,8,16], index: 0, kind: input, shape index: {}]
  %s1 = inlined_call_operand.vmem [shape: f32[16,512], index: 1, kind: input, shape index: {}]
  %s2 = inlined_call_operand.vmem [shape: f32[128,512], index: 2, kind: input, shape index: {}]
  %s3 = inlined_call_operand.vmem [shape: f32[1,512], index: 3, kind: input, shape index: {}]
  %s4 = inlined_call_operand.vmem [shape: f32[128,128], index: 4, kind: input, shape index: {}]
  %s5 = inlined_call_operand.vmem [shape: f32[1,128], index: 5, kind: input, shape index: {}]
  %s6 = inlined_call_operand.vmem [shape: f32[8,128], index: 6, kind: input, shape index: {}]
  %s7 = inlined_call_operand.vmem [shape: f32[8,128], index: 7, kind: input, shape index: {}]
  %s8 = inlined_call_operand.vmem [shape: f32[8,128], index: 8, kind: output, shape index: {}]
  %s9 = sld [smem:[#allocation0]]
  $region42: #{lstm_forward.1} parent=0
    _
  %s11 = ssub.s32 1, %s9
  %s12 = scalar_select 0, %s11, %s9
  // Predicated region
  $region2: #{lstm_forward.1} parent=0 // pred_check
    _
  $region3: #{lstm_forward.1} parent=0 // pred_check_branch
    %14 = sbr.rel (0) target = $region5
  $region4: #{lstm_forward.1} parent=0 // pred_region
    _
  $region5: #{lstm_forward.1} parent=0 // pred_fallthru
    _
  // Predicated region
  $region6: #{lstm_forward.1} parent=0 // pred_check
    _
  $region7: #{lstm_forward.1} parent=0 // pred_check_branch
    %16 = sbr.rel (0) target = $region9
  $region8: #{lstm_forward.1} parent=0 // pred_region
    _
  $region9: #{lstm_forward.1} parent=0 // pred_fallthru
    _
  // Predicated region
  $region10: #{lstm_forward.1} parent=0 // pred_check
    _
  $region11: #{lstm_forward.1} parent=0 // pred_check_branch
    %18 = sbr.rel (0) target = $region13
  $region12: #{lstm_forward.1} parent=0 // pred_region
    _
  $region13: #{lstm_forward.1} parent=0 // pred_fallthru
    _
  // Predicated region
  $region14: #{lstm_forward.1} parent=0 // pred_check
    _
  $region15: #{lstm_forward.1} parent=0 // pred_check_branch
    %20 = sbr.rel (0) target = $region17
  $region16: #{lstm_forward.1} parent=0 // pred_region
    _
  $region17: #{lstm_forward.1} parent=0 // pred_fallthru
    _
  // Predicated region
  $region18: #{lstm_forward.1} parent=0 // pred_check
    _
  $region19: #{lstm_forward.1} parent=0 // pred_check_branch
    %22 = sbr.rel (0) target = $region21
  $region20: #{lstm_forward.1} parent=0 // pred_region
    _
  $region21: #{lstm_forward.1} parent=0 // pred_fallthru
    _
  // Predicated region
  $region22: #{lstm_forward.1} parent=0 // pred_check
    _
  $region23: #{lstm_forward.1} parent=0 // pred_check_branch
    %24 = sbr.rel (0) target = $region25
  $region24: #{lstm_forward.1} parent=0 // pred_region
    _
  $region25: #{lstm_forward.1} parent=0 // pred_fallthru
    _
  // Predicated region
  $region26: #{lstm_forward.1} parent=0 // pred_check
    _
  $region27: #{lstm_forward.1} parent=0 // pred_check_branch
    %26 = sbr.rel (0) target = $region29
  $region28: #{lstm_forward.1} parent=0 // pred_region
    _
  $region29: #{lstm_forward.1} parent=0 // pred_fallthru
    _
  // Predicated region
  $region30: #{lstm_forward.1} parent=0 // pred_check
    _
  $region31: #{lstm_forward.1} parent=0 // pred_check_branch
    %28 = sbr.rel (0) target = $region33
  $region32: #{lstm_forward.1} parent=0 // pred_region
    _
  $region33: #{lstm_forward.1} parent=0 // pred_fallthru
    _
  %v29 = vld [vmem:[%s0] sm:$0xff]
  %v30 = vld [vmem:[%s0 + $0x8] sm:$0xff]
  %v31 = vld [vmem:[%s0 + $0x10] sm:$0xff]
  %v32 = vld [vmem:[%s0 + $0x18] sm:$0xff]
  %v33 = vld [vmem:[%s0 + $0x20] sm:$0xff]
  %v34 = vld [vmem:[%s0 + $0x28] sm:$0xff]
  %v35 = vld [vmem:[%s0 + $0x30] sm:$0xff]
  %v36 = vld [vmem:[%s0 + $0x38] sm:$0xff]
  %v37 = vld [vmem:[%s1] sm:$0xff]
  %v38 = vld [vmem:[%s1 + $0x8] sm:$0xff]
  %v39 = vld [vmem:[%s1 + $0x10] sm:$0xff]
  %v40 = vld [vmem:[%s1 + $0x18] sm:$0xff]
  %v41 = vld [vmem:[%s1 + $0x20] sm:$0xff]
  %v42 = vld [vmem:[%s1 + $0x28] sm:$0xff]
  %v43 = vld [vmem:[%s1 + $0x30] sm:$0xff]
  %v44 = vld [vmem:[%s1 + $0x38] sm:$0xff]
  %v45 = vld [vmem:[%s3] sm:$0xf]
  %v47 = vlaneseq
  %v48 = vshrl.u32 %v47, 7
  %v49 = vsub.s32 0, %v48
  %v50 = vrot.slane %v45, %v49
  %v51 = vlaneseq
  %v52 = vshrl.u32 %v51, 7
  %v53 = vsub.s32 1, %v52
  %v54 = vrot.slane %v45, %v53
  %v55 = vlaneseq
  %v56 = vshrl.u32 %v55, 7
  %v57 = vsub.s32 2, %v56
  %v58 = vrot.slane %v45, %v57
  %v59 = vlaneseq
  %v60 = vshrl.u32 %v59, 7
  %v61 = vsub.s32 3, %v60
  %v62 = vrot.slane %v45, %v61
  %vm67 = vcmask 130048
  %v69 = vsel %vm67, %v29, 0
  %v72 = vsel %vm67, %v30, 0
  %v75 = vsel %vm67, %v31, 0
  %v78 = vsel %vm67, %v32, 0
  %v81 = vsel %vm67, %v33, 0
  %v84 = vsel %vm67, %v34, 0
  %v87 = vsel %vm67, %v35, 0
  %v90 = vsel %vm67, %v36, 0
  %92 = vmatprep.subr.mxu0 0.0
  %93 = vmatpush1.msra.mxu0 0.0
  %94 = vmatprep.subr.mxu0 0.0
  %95 = vmatpush1.msra.mxu0 0.0
  %96 = vmatprep.subr.mxu0 0.0
  %97 = vmatpush1.msra.mxu0 0.0
  %98 = vmatprep.subr.mxu0 0.0
  %99 = vmatpush1.msra.mxu0 0.0
  %100 = vmatprep.subr.mxu0 0.0
  %101 = vmatpush1.msra.mxu0 0.0
  %102 = vmatprep.subr.mxu0 0.0
  %103 = vmatpush1.msra.mxu0 0.0
  %104 = vmatprep.subr.mxu0 0.0
  %105 = vmatpush1.msra.mxu0 0.0
  %106 = vmatprep.subr.mxu0 0.0
  %107 = vmatpush1.msra.mxu0 0.0
  %108 = vmatprep.subr.mxu0 0.0
  %109 = vmatpush1.msra.mxu0 0.0
  %110 = vmatprep.subr.mxu0 0.0
  %111 = vmatpush1.msra.mxu0 0.0
  %112 = vmatprep.subr.mxu0 0.0
  %113 = vmatpush1.msra.mxu0 0.0
  %114 = vmatprep.subr.mxu0 0.0
  %115 = vmatpush1.msra.mxu0 0.0
  %116 = vmatprep.subr.mxu0 0.0
  %117 = vmatpush1.msra.mxu0 0.0
  %118 = vmatprep.subr.mxu0 0.0
  %119 = vmatpush1.msra.mxu0 0.0
  %120 = vmatprep.subr.mxu0 %v42
  %121 = vmatpush1.msra.mxu0 %v41
  %122 = vmatprep.subr.mxu0 %v38
  %123 = vmatpush1.msra.mxu0 %v37
  %124 = vmatprep.subr.mxu0 0.0
  %125 = vmatpush2.msra.mxu0 0.0
  %126 = vmatprep.subr.mxu0 0.0
  %127 = vmatpush2.msra.mxu0 0.0
  %128 = vmatprep.subr.mxu0 0.0
  %129 = vmatpush2.msra.mxu0 0.0
  %130 = vmatprep.subr.mxu0 0.0
  %131 = vmatpush2.msra.mxu0 0.0
  %132 = vmatprep.subr.mxu0 0.0
  %133 = vmatpush2.msra.mxu0 0.0
  %134 = vmatprep.subr.mxu0 0.0
  %135 = vmatpush2.msra.mxu0 0.0
  %136 = vmatprep.subr.mxu0 0.0
  %137 = vmatpush2.msra.mxu0 0.0
  %138 = vmatprep.subr.mxu0 0.0
  %139 = vmatpush2.msra.mxu0 0.0
  %140 = vmatprep.subr.mxu0 0.0
  %141 = vmatpush2.msra.mxu0 0.0
  %142 = vmatprep.subr.mxu0 0.0
  %143 = vmatpush2.msra.mxu0 0.0
  %144 = vmatprep.subr.mxu0 0.0
  %145 = vmatpush2.msra.mxu0 0.0
  %146 = vmatprep.subr.mxu0 0.0
  %147 = vmatpush2.msra.mxu0 0.0
  %148 = vmatprep.subr.mxu0 0.0
  %149 = vmatpush2.msra.mxu0 0.0
  %150 = vmatprep.subr.mxu0 0.0
  %151 = vmatpush2.msra.mxu0 0.0
  %152 = vmatprep.subr.mxu0 0.0
  %153 = vmatpush2.msra.mxu0 0.0
  %154 = vmatprep.subr.mxu0 0.0
  %155 = vmatpush2.msra.mxu0 0.0
  %156 = vmatprep.mubr.f32.mxu0 0.0
  %157 = vmatmul.mubr.f32.gmra.mxu0 %v69
  %v158 = vpop.f32.mrf.mxu0
  %v159 = vadd.f32 %v50, %v158
  %v160 = vpop.f32.mrf.mxu0
  %v161 = vadd.f32 %v54, %v160
  %162 = vmatprep.mubr.f32.mxu0 0.0
  %163 = vmatmul.mubr.f32.gmra.mxu0 %v72
  %v164 = vpop.f32.mrf.mxu0
  %v165 = vadd.f32 %v50, %v164
  %v166 = vpop.f32.mrf.mxu0
  %v167 = vadd.f32 %v54, %v166
  %168 = vmatprep.mubr.f32.mxu0 0.0
  %169 = vmatmul.mubr.f32.gmra.mxu0 %v75
  %v170 = vpop.f32.mrf.mxu0
  %v171 = vadd.f32 %v50, %v170
  %v172 = vpop.f32.mrf.mxu0
  %v173 = vadd.f32 %v54, %v172
  %174 = vmatprep.mubr.f32.mxu0 0.0
  %175 = vmatmul.mubr.f32.gmra.mxu0 %v78
  %v176 = vpop.f32.mrf.mxu0
  %v177 = vadd.f32 %v50, %v176
  %v178 = vpop.f32.mrf.mxu0
  %v179 = vadd.f32 %v54, %v178
  %180 = vmatprep.mubr.f32.mxu0 0.0
  %181 = vmatmul.mubr.f32.gmra.mxu0 %v81
  %v182 = vpop.f32.mrf.mxu0
  %v183 = vadd.f32 %v50, %v182
  %v184 = vpop.f32.mrf.mxu0
  %v185 = vadd.f32 %v54, %v184
  %186 = vmatprep.mubr.f32.mxu0 0.0
  %187 = vmatmul.mubr.f32.gmra.mxu0 %v84
  %v188 = vpop.f32.mrf.mxu0
  %v189 = vadd.f32 %v50, %v188
  %v190 = vpop.f32.mrf.mxu0
  %v191 = vadd.f32 %v54, %v190
  %192 = vmatprep.mubr.f32.mxu0 0.0
  %193 = vmatmul.mubr.f32.gmra.mxu0 %v87
  %v194 = vpop.f32.mrf.mxu0
  %v195 = vadd.f32 %v50, %v194
  %v196 = vpop.f32.mrf.mxu0
  %v197 = vadd.f32 %v54, %v196
  %198 = vmatprep.mubr.f32.mxu0 0.0
  %199 = vmatmul.mubr.f32.gmra.mxu0 %v90
  %v200 = vpop.f32.mrf.mxu0
  %v201 = vadd.f32 %v50, %v200
  %v202 = vpop.f32.mrf.mxu0
  %v203 = vadd.f32 %v54, %v202
  %204 = vdwg.mxu0
  %205 = vmatprep.subr.mxu0 0.0
  %206 = vmatpush1.msra.mxu0 0.0
  %207 = vmatprep.subr.mxu0 0.0
  %208 = vmatpush1.msra.mxu0 0.0
  %209 = vmatprep.subr.mxu0 0.0
  %210 = vmatpush1.msra.mxu0 0.0
  %211 = vmatprep.subr.mxu0 0.0
  %212 = vmatpush1.msra.mxu0 0.0
  %213 = vmatprep.subr.mxu0 0.0
  %214 = vmatpush1.msra.mxu0 0.0
  %215 = vmatprep.subr.mxu0 0.0
  %216 = vmatpush1.msra.mxu0 0.0
  %217 = vmatprep.subr.mxu0 0.0
  %218 = vmatpush1.msra.mxu0 0.0
  %219 = vmatprep.subr.mxu0 0.0
  %220 = vmatpush1.msra.mxu0 0.0
  %221 = vmatprep.subr.mxu0 0.0
  %222 = vmatpush1.msra.mxu0 0.0
  %223 = vmatprep.subr.mxu0 0.0
  %224 = vmatpush1.msra.mxu0 0.0
  %225 = vmatprep.subr.mxu0 0.0
  %226 = vmatpush1.msra.mxu0 0.0
  %227 = vmatprep.subr.mxu0 0.0
  %228 = vmatpush1.msra.mxu0 0.0
  %229 = vmatprep.subr.mxu0 0.0
  %230 = vmatpush1.msra.mxu0 0.0
  %231 = vmatprep.subr.mxu0 0.0
  %232 = vmatpush1.msra.mxu0 0.0
  %233 = vmatprep.subr.mxu0 %v44
  %234 = vmatpush1.msra.mxu0 %v43
  %235 = vmatprep.subr.mxu0 %v40
  %236 = vmatpush1.msra.mxu0 %v39
  %237 = vmatprep.subr.mxu0 0.0
  %238 = vmatpush2.msra.mxu0 0.0
  %239 = vmatprep.subr.mxu0 0.0
  %240 = vmatpush2.msra.mxu0 0.0
  %241 = vmatprep.subr.mxu0 0.0
  %242 = vmatpush2.msra.mxu0 0.0
  %243 = vmatprep.subr.mxu0 0.0
  %244 = vmatpush2.msra.mxu0 0.0
  %245 = vmatprep.subr.mxu0 0.0
  %246 = vmatpush2.msra.mxu0 0.0
  %247 = vmatprep.subr.mxu0 0.0
  %248 = vmatpush2.msra.mxu0 0.0
  %249 = vmatprep.subr.mxu0 0.0
  %250 = vmatpush2.msra.mxu0 0.0
  %251 = vmatprep.subr.mxu0 0.0
  %252 = vmatpush2.msra.mxu0 0.0
  %253 = vmatprep.subr.mxu0 0.0
  %254 = vmatpush2.msra.mxu0 0.0
  %255 = vmatprep.subr.mxu0 0.0
  %256 = vmatpush2.msra.mxu0 0.0
  %257 = vmatprep.subr.mxu0 0.0
  %258 = vmatpush2.msra.mxu0 0.0
  %259 = vmatprep.subr.mxu0 0.0
  %260 = vmatpush2.msra.mxu0 0.0
  %261 = vmatprep.subr.mxu0 0.0
  %262 = vmatpush2.msra.mxu0 0.0
  %263 = vmatprep.subr.mxu0 0.0
  %264 = vmatpush2.msra.mxu0 0.0
  %265 = vmatprep.subr.mxu0 0.0
  %266 = vmatpush2.msra.mxu0 0.0
  %267 = vmatprep.subr.mxu0 0.0
  %268 = vmatpush2.msra.mxu0 0.0
  %269 = vmatprep.mubr.f32.mxu0 0.0
  %270 = vmatmul.mubr.f32.gmra.mxu0 %v69
  %v271 = vpop.f32.mrf.mxu0
  %v272 = vadd.f32 %v58, %v271
  %v273 = vpop.f32.mrf.mxu0
  %v274 = vadd.f32 %v62, %v273
  %275 = vmatprep.mubr.f32.mxu0 0.0
  %276 = vmatmul.mubr.f32.gmra.mxu0 %v72
  %v277 = vpop.f32.mrf.mxu0
  %v278 = vadd.f32 %v58, %v277
  %v279 = vpop.f32.mrf.mxu0
  %v280 = vadd.f32 %v62, %v279
  %281 = vmatprep.mubr.f32.mxu0 0.0
  %282 = vmatmul.mubr.f32.gmra.mxu0 %v75
  %v283 = vpop.f32.mrf.mxu0
  %v284 = vadd.f32 %v58, %v283
  %v285 = vpop.f32.mrf.mxu0
  %v286 = vadd.f32 %v62, %v285
  %287 = vmatprep.mubr.f32.mxu0 0.0
  %288 = vmatmul.mubr.f32.gmra.mxu0 %v78
  %v289 = vpop.f32.mrf.mxu0
  %v290 = vadd.f32 %v58, %v289
  %v291 = vpop.f32.mrf.mxu0
  %v292 = vadd.f32 %v62, %v291
  %293 = vmatprep.mubr.f32.mxu0 0.0
  %294 = vmatmul.mubr.f32.gmra.mxu0 %v81
  %v295 = vpop.f32.mrf.mxu0
  %v296 = vadd.f32 %v58, %v295
  %v297 = vpop.f32.mrf.mxu0
  %v298 = vadd.f32 %v62, %v297
  %299 = vmatprep.mubr.f32.mxu0 0.0
  %300 = vmatmul.mubr.f32.gmra.mxu0 %v84
  %v301 = vpop.f32.mrf.mxu0
  %v302 = vadd.f32 %v58, %v301
  %v303 = vpop.f32.mrf.mxu0
  %v304 = vadd.f32 %v62, %v303
  %305 = vmatprep.mubr.f32.mxu0 0.0
  %306 = vmatmul.mubr.f32.gmra.mxu0 %v87
  %v307 = vpop.f32.mrf.mxu0
  %v308 = vadd.f32 %v58, %v307
  %v309 = vpop.f32.mrf.mxu0
  %v310 = vadd.f32 %v62, %v309
  %311 = vmatprep.mubr.f32.mxu0 0.0
  %312 = vmatmul.mubr.f32.gmra.mxu0 %v90
  %v313 = vpop.f32.mrf.mxu0
  %v314 = vadd.f32 %v58, %v313
  %v315 = vpop.f32.mrf.mxu0
  %v316 = vadd.f32 %v62, %v315
  %317 = vdwg.mxu0
  %318 = vst [vmem:[#allocation2] sm:$0xff] %v159
  %319 = vst [vmem:[#allocation2 + $0x8] sm:$0xff] %v161
  %320 = vst [vmem:[#allocation2 + $0x10] sm:$0xff] %v272
  %321 = vst [vmem:[#allocation2 + $0x18] sm:$0xff] %v274
  %322 = vst [vmem:[#allocation2 + $0x20] sm:$0xff] %v165
  %323 = vst [vmem:[#allocation2 + $0x28] sm:$0xff] %v167
  %324 = vst [vmem:[#allocation2 + $0x30] sm:$0xff] %v278
  %325 = vst [vmem:[#allocation2 + $0x38] sm:$0xff] %v280
  %326 = vst [vmem:[#allocation2 + $0x40] sm:$0xff] %v171
  %327 = vst [vmem:[#allocation2 + $0x48] sm:$0xff] %v173
  %328 = vst [vmem:[#allocation2 + $0x50] sm:$0xff] %v284
  %329 = vst [vmem:[#allocation2 + $0x58] sm:$0xff] %v286
  %330 = vst [vmem:[#allocation2 + $0x60] sm:$0xff] %v177
  %331 = vst [vmem:[#allocation2 + $0x68] sm:$0xff] %v179
  %332 = vst [vmem:[#allocation2 + $0x70] sm:$0xff] %v290
  %333 = vst [vmem:[#allocation2 + $0x78] sm:$0xff] %v292
  %334 = vst [vmem:[#allocation2 + $0x80] sm:$0xff] %v183
  %335 = vst [vmem:[#allocation2 + $0x88] sm:$0xff] %v185
  %336 = vst [vmem:[#allocation2 + $0x90] sm:$0xff] %v296
  %337 = vst [vmem:[#allocation2 + $0x98] sm:$0xff] %v298
  %338 = vst [vmem:[#allocation2 + $0xa0] sm:$0xff] %v189
  %339 = vst [vmem:[#allocation2 + $0xa8] sm:$0xff] %v191
  %340 = vst [vmem:[#allocation2 + $0xb0] sm:$0xff] %v302
  %341 = vst [vmem:[#allocation2 + $0xb8] sm:$0xff] %v304
  %342 = vst [vmem:[#allocation2 + $0xc0] sm:$0xff] %v195
  %343 = vst [vmem:[#allocation2 + $0xc8] sm:$0xff] %v197
  %344 = vst [vmem:[#allocation2 + $0xd0] sm:$0xff] %v308
  %345 = vst [vmem:[#allocation2 + $0xd8] sm:$0xff] %v310
  %346 = vst [vmem:[#allocation2 + $0xe0] sm:$0xff] %v201
  %347 = vst [vmem:[#allocation2 + $0xe8] sm:$0xff] %v203
  %348 = vst [vmem:[#allocation2 + $0xf0] sm:$0xff] %v314
  %349 = vst [vmem:[#allocation2 + $0xf8] sm:$0xff] %v316
  %v350 = vld [vmem:[%s6] sm:$0xff]
  %v351 = vld [vmem:[%s7] sm:$0xff]
  %v352 = vld [vmem:[#allocation2] sm:$0xff]
  %v353 = vld [vmem:[#allocation2 + $0x8] sm:$0xff]
  %v354 = vld [vmem:[#allocation2 + $0x10] sm:$0xff]
  %v355 = vld [vmem:[#allocation2 + $0x18] sm:$0xff]
  %v356 = vld [vmem:[%s2] sm:$0xff]
  %v357 = vld [vmem:[%s2 + $0x8] sm:$0xff]
  %v358 = vld [vmem:[%s2 + $0x10] sm:$0xff]
  %v359 = vld [vmem:[%s2 + $0x18] sm:$0xff]
  %v360 = vld [vmem:[%s2 + $0x20] sm:$0xff]
  %v361 = vld [vmem:[%s2 + $0x28] sm:$0xff]
  %v362 = vld [vmem:[%s2 + $0x30] sm:$0xff]
  %v363 = vld [vmem:[%s2 + $0x38] sm:$0xff]
  %v364 = vld [vmem:[%s2 + $0x40] sm:$0xff]
  %v365 = vld [vmem:[%s2 + $0x48] sm:$0xff]
  %v366 = vld [vmem:[%s2 + $0x50] sm:$0xff]
  %v367 = vld [vmem:[%s2 + $0x58] sm:$0xff]
  %v368 = vld [vmem:[%s2 + $0x60] sm:$0xff]
  %v369 = vld [vmem:[%s2 + $0x68] sm:$0xff]
  %v370 = vld [vmem:[%s2 + $0x70] sm:$0xff]
  %v371 = vld [vmem:[%s2 + $0x78] sm:$0xff]
  %v372 = vld [vmem:[%s2 + $0x80] sm:$0xff]
  %v373 = vld [vmem:[%s2 + $0x88] sm:$0xff]
  %v374 = vld [vmem:[%s2 + $0x90] sm:$0xff]
  %v375 = vld [vmem:[%s2 + $0x98] sm:$0xff]
  %v376 = vld [vmem:[%s2 + $0xa0] sm:$0xff]
  %v377 = vld [vmem:[%s2 + $0xa8] sm:$0xff]
  %v378 = vld [vmem:[%s2 + $0xb0] sm:$0xff]
  %v379 = vld [vmem:[%s2 + $0xb8] sm:$0xff]
  %v380 = vld [vmem:[%s2 + $0xc0] sm:$0xff]
  %v381 = vld [vmem:[%s2 + $0xc8] sm:$0xff]
  %v382 = vld [vmem:[%s2 + $0xd0] sm:$0xff]
  %v383 = vld [vmem:[%s2 + $0xd8] sm:$0xff]
  %v384 = vld [vmem:[%s2 + $0xe0] sm:$0xff]
  %v385 = vld [vmem:[%s2 + $0xe8] sm:$0xff]
  %v386 = vld [vmem:[%s2 + $0xf0] sm:$0xff]
  %v387 = vld [vmem:[%s2 + $0xf8] sm:$0xff]
  %v388 = vld [vmem:[%s2 + $0x100] sm:$0xff]
  %v389 = vld [vmem:[%s2 + $0x108] sm:$0xff]
  %v390 = vld [vmem:[%s2 + $0x110] sm:$0xff]
  %v391 = vld [vmem:[%s2 + $0x118] sm:$0xff]
  %v392 = vld [vmem:[%s2 + $0x120] sm:$0xff]
  %v393 = vld [vmem:[%s2 + $0x128] sm:$0xff]
  %v394 = vld [vmem:[%s2 + $0x130] sm:$0xff]
  %v395 = vld [vmem:[%s2 + $0x138] sm:$0xff]
  %v396 = vld [vmem:[%s2 + $0x140] sm:$0xff]
  %v397 = vld [vmem:[%s2 + $0x148] sm:$0xff]
  %v398 = vld [vmem:[%s2 + $0x150] sm:$0xff]
  %v399 = vld [vmem:[%s2 + $0x158] sm:$0xff]
  %v400 = vld [vmem:[%s2 + $0x160] sm:$0xff]
  %v401 = vld [vmem:[%s2 + $0x168] sm:$0xff]
  %v402 = vld [vmem:[%s2 + $0x170] sm:$0xff]
  %v403 = vld [vmem:[%s2 + $0x178] sm:$0xff]
  %v404 = vld [vmem:[%s2 + $0x180] sm:$0xff]
  %v405 = vld [vmem:[%s2 + $0x188] sm:$0xff]
  %v406 = vld [vmem:[%s2 + $0x190] sm:$0xff]
  %v407 = vld [vmem:[%s2 + $0x198] sm:$0xff]
  %v408 = vld [vmem:[%s2 + $0x1a0] sm:$0xff]
  %v409 = vld [vmem:[%s2 + $0x1a8] sm:$0xff]
  %v410 = vld [vmem:[%s2 + $0x1b0] sm:$0xff]
  %v411 = vld [vmem:[%s2 + $0x1b8] sm:$0xff]
  %v412 = vld [vmem:[%s2 + $0x1c0] sm:$0xff]
  %v413 = vld [vmem:[%s2 + $0x1c8] sm:$0xff]
  %v414 = vld [vmem:[%s2 + $0x1d0] sm:$0xff]
  %v415 = vld [vmem:[%s2 + $0x1d8] sm:$0xff]
  %v416 = vld [vmem:[%s2 + $0x1e0] sm:$0xff]
  %v417 = vld [vmem:[%s2 + $0x1e8] sm:$0xff]
  %v418 = vld [vmem:[%s2 + $0x1f0] sm:$0xff]
  %v419 = vld [vmem:[%s2 + $0x1f8] sm:$0xff]
  %420 = vmatprep.subr.mxu0 %v417
  %421 = vmatpush1.msra.mxu0 %v416
  %422 = vmatprep.subr.mxu0 %v413
  %423 = vmatpush1.msra.mxu0 %v412
  %424 = vmatprep.subr.mxu0 %v409
  %425 = vmatpush1.msra.mxu0 %v408
  %426 = vmatprep.subr.mxu0 %v405
  %427 = vmatpush1.msra.mxu0 %v404
  %428 = vmatprep.subr.mxu0 %v401
  %429 = vmatpush1.msra.mxu0 %v400
  %430 = vmatprep.subr.mxu0 %v397
  %431 = vmatpush1.msra.mxu0 %v396
  %432 = vmatprep.subr.mxu0 %v393
  %433 = vmatpush1.msra.mxu0 %v392
  %434 = vmatprep.subr.mxu0 %v389
  %435 = vmatpush1.msra.mxu0 %v388
  %436 = vmatprep.subr.mxu0 %v385
  %437 = vmatpush1.msra.mxu0 %v384
  %438 = vmatprep.subr.mxu0 %v381
  %439 = vmatpush1.msra.mxu0 %v380
  %440 = vmatprep.subr.mxu0 %v377
  %441 = vmatpush1.msra.mxu0 %v376
  %442 = vmatprep.subr.mxu0 %v373
  %443 = vmatpush1.msra.mxu0 %v372
  %444 = vmatprep.subr.mxu0 %v369
  %445 = vmatpush1.msra.mxu0 %v368
  %446 = vmatprep.subr.mxu0 %v365
  %447 = vmatpush1.msra.mxu0 %v364
  %448 = vmatprep.subr.mxu0 %v361
  %449 = vmatpush1.msra.mxu0 %v360
  %450 = vmatprep.subr.mxu0 %v357
  %451 = vmatpush1.msra.mxu0 %v356
  %452 = vmatprep.subr.mxu0 0.0
  %453 = vmatpush2.msra.mxu0 0.0
  %454 = vmatprep.subr.mxu0 0.0
  %455 = vmatpush2.msra.mxu0 0.0
  %456 = vmatprep.subr.mxu0 0.0
  %457 = vmatpush2.msra.mxu0 0.0
  %458 = vmatprep.subr.mxu0 0.0
  %459 = vmatpush2.msra.mxu0 0.0
  %460 = vmatprep.subr.mxu0 0.0
  %461 = vmatpush2.msra.mxu0 0.0
  %462 = vmatprep.subr.mxu0 0.0
  %463 = vmatpush2.msra.mxu0 0.0
  %464 = vmatprep.subr.mxu0 0.0
  %465 = vmatpush2.msra.mxu0 0.0
  %466 = vmatprep.subr.mxu0 0.0
  %467 = vmatpush2.msra.mxu0 0.0
  %468 = vmatprep.subr.mxu0 0.0
  %469 = vmatpush2.msra.mxu0 0.0
  %470 = vmatprep.subr.mxu0 0.0
  %471 = vmatpush2.msra.mxu0 0.0
  %472 = vmatprep.subr.mxu0 0.0
  %473 = vmatpush2.msra.mxu0 0.0
  %474 = vmatprep.subr.mxu0 0.0
  %475 = vmatpush2.msra.mxu0 0.0
  %476 = vmatprep.subr.mxu0 0.0
  %477 = vmatpush2.msra.mxu0 0.0
  %478 = vmatprep.subr.mxu0 0.0
  %479 = vmatpush2.msra.mxu0 0.0
  %480 = vmatprep.subr.mxu0 0.0
  %481 = vmatpush2.msra.mxu0 0.0
  %482 = vmatprep.subr.mxu0 0.0
  %483 = vmatpush2.msra.mxu0 0.0
  %484 = vmatprep.mubr.f32.mxu0 0.0
  %485 = vmatmul.mubr.f32.gmra.mxu0 %v350
  %v486 = vpop.f32.mrf.mxu0
  %v487 = vadd.f32 0.0, %v486
  %v488 = vpop.f32.mrf.mxu0
  %v489 = vadd.f32 0.0, %v488
  %490 = vdwg.mxu0
  %491 = vmatprep.subr.mxu0 %v419
  %492 = vmatpush1.msra.mxu0 %v418
  %493 = vmatprep.subr.mxu0 %v415
  %494 = vmatpush1.msra.mxu0 %v414
  %495 = vmatprep.subr.mxu0 %v411
  %496 = vmatpush1.msra.mxu0 %v410
  %497 = vmatprep.subr.mxu0 %v407
  %498 = vmatpush1.msra.mxu0 %v406
  %499 = vmatprep.subr.mxu0 %v403
  %500 = vmatpush1.msra.mxu0 %v402
  %501 = vmatprep.subr.mxu0 %v399
  %502 = vmatpush1.msra.mxu0 %v398
  %503 = vmatprep.subr.mxu0 %v395
  %504 = vmatpush1.msra.mxu0 %v394
  %505 = vmatprep.subr.mxu0 %v391
  %506 = vmatpush1.msra.mxu0 %v390
  %507 = vmatprep.subr.mxu0 %v387
  %508 = vmatpush1.msra.mxu0 %v386
  %509 = vmatprep.subr.mxu0 %v383
  %510 = vmatpush1.msra.mxu0 %v382
  %511 = vmatprep.subr.mxu0 %v379
  %512 = vmatpush1.msra.mxu0 %v378
  %513 = vmatprep.subr.mxu0 %v375
  %514 = vmatpush1.msra.mxu0 %v374
  %515 = vmatprep.subr.mxu0 %v371
  %516 = vmatpush1.msra.mxu0 %v370
  %517 = vmatprep.subr.mxu0 %v367
  %518 = vmatpush1.msra.mxu0 %v366
  %519 = vmatprep.subr.mxu0 %v363
  %520 = vmatpush1.msra.mxu0 %v362
  %521 = vmatprep.subr.mxu0 %v359
  %522 = vmatpush1.msra.mxu0 %v358
  %523 = vmatprep.subr.mxu0 0.0
  %524 = vmatpush2.msra.mxu0 0.0
  %525 = vmatprep.subr.mxu0 0.0
  %526 = vmatpush2.msra.mxu0 0.0
  %527 = vmatprep.subr.mxu0 0.0
  %528 = vmatpush2.msra.mxu0 0.0
  %529 = vmatprep.subr.mxu0 0.0
  %530 = vmatpush2.msra.mxu0 0.0
  %531 = vmatprep.subr.mxu0 0.0
  %532 = vmatpush2.msra.mxu0 0.0
  %533 = vmatprep.subr.mxu0 0.0
  %534 = vmatpush2.msra.mxu0 0.0
  %535 = vmatprep.subr.mxu0 0.0
  %536 = vmatpush2.msra.mxu0 0.0
  %537 = vmatprep.subr.mxu0 0.0
  %538 = vmatpush2.msra.mxu0 0.0
  %539 = vmatprep.subr.mxu0 0.0
  %540 = vmatpush2.msra.mxu0 0.0
  %541 = vmatprep.subr.mxu0 0.0
  %542 = vmatpush2.msra.mxu0 0.0
  %543 = vmatprep.subr.mxu0 0.0
  %544 = vmatpush2.msra.mxu0 0.0
  %545 = vmatprep.subr.mxu0 0.0
  %546 = vmatpush2.msra.mxu0 0.0
  %547 = vmatprep.subr.mxu0 0.0
  %548 = vmatpush2.msra.mxu0 0.0
  %549 = vmatprep.subr.mxu0 0.0
  %550 = vmatpush2.msra.mxu0 0.0
  %551 = vmatprep.subr.mxu0 0.0
  %552 = vmatpush2.msra.mxu0 0.0
  %553 = vmatprep.subr.mxu0 0.0
  %554 = vmatpush2.msra.mxu0 0.0
  %555 = vmatprep.mubr.f32.mxu0 0.0
  %556 = vmatmul.mubr.f32.gmra.mxu0 %v350
  %v557 = vpop.f32.mrf.mxu0
  %v558 = vadd.f32 0.0, %v557
  %v559 = vpop.f32.mrf.mxu0
  %v560 = vadd.f32 0.0, %v559
  %561 = vdwg.mxu0
  %v562 = vadd.f32 %v352, %v487
  %v563 = vadd.f32 %v353, %v489
  %v564 = vadd.f32 %v354, %v558
  %v565 = vadd.f32 %v355, %v560
  %v566 = vmul.f32 %v562, 0.5
  %v567 = vtanh.pop %v566
  %v568 = vmul.f32 %v567, 0.5
  %v569 = vadd.f32 %v568, 0.5
  %v570 = vmul.f32 %v563, 0.5
  %v571 = vtanh.pop %v570
  %v572 = vmul.f32 %v571, 0.5
  %v573 = vadd.f32 %v572, 0.5
  %v574 = vtanh.pop %v564
  %v575 = vmul.f32 %v565, 0.5
  %v576 = vtanh.pop %v575
  %v577 = vmul.f32 %v576, 0.5
  %v578 = vadd.f32 %v577, 0.5
  %v579 = vmul.f32 %v573, %v351
  %v580 = vmul.f32 %v569, %v574
  %v581 = vadd.f32 %v579, %v580
  %v582 = vtanh.pop %v581
  %v583 = vmul.f32 %v578, %v582
  %s584 = scalar_lea.vmem [#allocation2], 32
  %v585 = vld [vmem:[%s584] sm:$0xff]
  %v586 = vld [vmem:[%s584 + $0x8] sm:$0xff]
  %v587 = vld [vmem:[%s584 + $0x10] sm:$0xff]
  %v588 = vld [vmem:[%s584 + $0x18] sm:$0xff]
  %589 = vmatprep.subr.mxu0 %v417
  %590 = vmatpush1.msra.mxu0 %v416
  %591 = vmatprep.subr.mxu0 %v413
  %592 = vmatpush1.msra.mxu0 %v412
  %593 = vmatprep.subr.mxu0 %v409
  %594 = vmatpush1.msra.mxu0 %v408
  %595 = vmatprep.subr.mxu0 %v405
  %596 = vmatpush1.msra.mxu0 %v404
  %597 = vmatprep.subr.mxu0 %v401
  %598 = vmatpush1.msra.mxu0 %v400
  %599 = vmatprep.subr.mxu0 %v397
  %600 = vmatpush1.msra.mxu0 %v396
  %601 = vmatprep.subr.mxu0 %v393
  %602 = vmatpush1.msra.mxu0 %v392
  %603 = vmatprep.subr.mxu0 %v389
  %604 = vmatpush1.msra.mxu0 %v388
  %605 = vmatprep.subr.mxu0 %v385
  %606 = vmatpush1.msra.mxu0 %v384
  %607 = vmatprep.subr.mxu0 %v381
  %608 = vmatpush1.msra.mxu0 %v380
  %609 = vmatprep.subr.mxu0 %v377
  %610 = vmatpush1.msra.mxu0 %v376
  %611 = vmatprep.subr.mxu0 %v373
  %612 = vmatpush1.msra.mxu0 %v372
  %613 = vmatprep.subr.mxu0 %v369
  %614 = vmatpush1.msra.mxu0 %v368
  %615 = vmatprep.subr.mxu0 %v365
  %616 = vmatpush1.msra.mxu0 %v364
  %617 = vmatprep.subr.mxu0 %v361
  %618 = vmatpush1.msra.mxu0 %v360
  %619 = vmatprep.subr.mxu0 %v357
  %620 = vmatpush1.msra.mxu0 %v356
  %621 = vmatprep.subr.mxu0 0.0
  %622 = vmatpush2.msra.mxu0 0.0
  %623 = vmatprep.subr.mxu0 0.0
  %624 = vmatpush2.msra.mxu0 0.0
  %625 = vmatprep.subr.mxu0 0.0
  %626 = vmatpush2.msra.mxu0 0.0
  %627 = vmatprep.subr.mxu0 0.0
  %628 = vmatpush2.msra.mxu0 0.0
  %629 = vmatprep.subr.mxu0 0.0
  %630 = vmatpush2.msra.mxu0 0.0
  %631 = vmatprep.subr.mxu0 0.0
  %632 = vmatpush2.msra.mxu0 0.0
  %633 = vmatprep.subr.mxu0 0.0
  %634 = vmatpush2.msra.mxu0 0.0
  %635 = vmatprep.subr.mxu0 0.0
  %636 = vmatpush2.msra.mxu0 0.0
  %637 = vmatprep.subr.mxu0 0.0
  %638 = vmatpush2.msra.mxu0 0.0
  %639 = vmatprep.subr.mxu0 0.0
  %640 = vmatpush2.msra.mxu0 0.0
  %641 = vmatprep.subr.mxu0 0.0
  %642 = vmatpush2.msra.mxu0 0.0
  %643 = vmatprep.subr.mxu0 0.0
  %644 = vmatpush2.msra.mxu0 0.0
  %645 = vmatprep.subr.mxu0 0.0
  %646 = vmatpush2.msra.mxu0 0.0
  %647 = vmatprep.subr.mxu0 0.0
  %648 = vmatpush2.msra.mxu0 0.0
  %649 = vmatprep.subr.mxu0 0.0
  %650 = vmatpush2.msra.mxu0 0.0
  %651 = vmatprep.subr.mxu0 0.0
  %652 = vmatpush2.msra.mxu0 0.0
  %653 = vmatprep.mubr.f32.mxu0 0.0
  %654 = vmatmul.mubr.f32.gmra.mxu0 %v583
  %v655 = vpop.f32.mrf.mxu0
  %v656 = vadd.f32 0.0, %v655
  %v657 = vpop.f32.mrf.mxu0
  %v658 = vadd.f32 0.0, %v657
  %659 = vdwg.mxu0
  %660 = vmatprep.subr.mxu0 %v419
  %661 = vmatpush1.msra.mxu0 %v418
  %662 = vmatprep.subr.mxu0 %v415
  %663 = vmatpush1.msra.mxu0 %v414
  %664 = vmatprep.subr.mxu0 %v411
  %665 = vmatpush1.msra.mxu0 %v410
  %666 = vmatprep.subr.mxu0 %v407
  %667 = vmatpush1.msra.mxu0 %v406
  %668 = vmatprep.subr.mxu0 %v403
  %669 = vmatpush1.msra.mxu0 %v402
  %670 = vmatprep.subr.mxu0 %v399
  %671 = vmatpush1.msra.mxu0 %v398
  %672 = vmatprep.subr.mxu0 %v395
  %673 = vmatpush1.msra.mxu0 %v394
  %674 = vmatprep.subr.mxu0 %v391
  %675 = vmatpush1.msra.mxu0 %v390
  %676 = vmatprep.subr.mxu0 %v387
  %677 = vmatpush1.msra.mxu0 %v386
  %678 = vmatprep.subr.mxu0 %v383
  %679 = vmatpush1.msra.mxu0 %v382
  %680 = vmatprep.subr.mxu0 %v379
  %681 = vmatpush1.msra.mxu0 %v378
  %682 = vmatprep.subr.mxu0 %v375
  %683 = vmatpush1.msra.mxu0 %v374
  %684 = vmatprep.subr.mxu0 %v371
  %685 = vmatpush1.msra.mxu0 %v370
  %686 = vmatprep.subr.mxu0 %v367
  %687 = vmatpush1.msra.mxu0 %v366
  %688 = vmatprep.subr.mxu0 %v363
  %689 = vmatpush1.msra.mxu0 %v362
  %690 = vmatprep.subr.mxu0 %v359
  %691 = vmatpush1.msra.mxu0 %v358
  %692 = vmatprep.subr.mxu0 0.0
  %693 = vmatpush2.msra.mxu0 0.0
  %694 = vmatprep.subr.mxu0 0.0
  %695 = vmatpush2.msra.mxu0 0.0
  %696 = vmatprep.subr.mxu0 0.0
  %697 = vmatpush2.msra.mxu0 0.0
  %698 = vmatprep.subr.mxu0 0.0
  %699 = vmatpush2.msra.mxu0 0.0
  %700 = vmatprep.subr.mxu0 0.0
  %701 = vmatpush2.msra.mxu0 0.0
  %702 = vmatprep.subr.mxu0 0.0
  %703 = vmatpush2.msra.mxu0 0.0
  %704 = vmatprep.subr.mxu0 0.0
  %705 = vmatpush2.msra.mxu0 0.0
  %706 = vmatprep.subr.mxu0 0.0
  %707 = vmatpush2.msra.mxu0 0.0
  %708 = vmatprep.subr.mxu0 0.0
  %709 = vmatpush2.msra.mxu0 0.0
  %710 = vmatprep.subr.mxu0 0.0
  %711 = vmatpush2.msra.mxu0 0.0
  %712 = vmatprep.subr.mxu0 0.0
  %713 = vmatpush2.msra.mxu0 0.0
  %714 = vmatprep.subr.mxu0 0.0
  %715 = vmatpush2.msra.mxu0 0.0
  %716 = vmatprep.subr.mxu0 0.0
  %717 = vmatpush2.msra.mxu0 0.0
  %718 = vmatprep.subr.mxu0 0.0
  %719 = vmatpush2.msra.mxu0 0.0
  %720 = vmatprep.subr.mxu0 0.0
  %721 = vmatpush2.msra.mxu0 0.0
  %722 = vmatprep.subr.mxu0 0.0
  %723 = vmatpush2.msra.mxu0 0.0
  %724 = vmatprep.mubr.f32.mxu0 0.0
  %725 = vmatmul.mubr.f32.gmra.mxu0 %v583
  %v726 = vpop.f32.mrf.mxu0
  %v727 = vadd.f32 0.0, %v726
  %v728 = vpop.f32.mrf.mxu0
  %v729 = vadd.f32 0.0, %v728
  %730 = vdwg.mxu0
  %v731 = vadd.f32 %v585, %v656
  %v732 = vadd.f32 %v586, %v658
  %v733 = vadd.f32 %v587, %v727
  %v734 = vadd.f32 %v588, %v729
  %v735 = vmul.f32 %v731, 0.5
  %v736 = vtanh.pop %v735
  %v737 = vmul.f32 %v736, 0.5
  %v738 = vadd.f32 %v737, 0.5
  %v739 = vmul.f32 %v732, 0.5
  %v740 = vtanh.pop %v739
  %v741 = vmul.f32 %v740, 0.5
  %v742 = vadd.f32 %v741, 0.5
  %v743 = vtanh.pop %v733
  %v744 = vmul.f32 %v734, 0.5
  %v745 = vtanh.pop %v744
  %v746 = vmul.f32 %v745, 0.5
  %v747 = vadd.f32 %v746, 0.5
  %v748 = vmul.f32 %v742, %v581
  %v749 = vmul.f32 %v738, %v743
  %v750 = vadd.f32 %v748, %v749
  %v751 = vtanh.pop %v750
  %v752 = vmul.f32 %v747, %v751
  %s753 = scalar_lea.vmem [#allocation2], 64
  %v754 = vld [vmem:[%s753] sm:$0xff]
  %v755 = vld [vmem:[%s753 + $0x8] sm:$0xff]
  %v756 = vld [vmem:[%s753 + $0x10] sm:$0xff]
  %v757 = vld [vmem:[%s753 + $0x18] sm:$0xff]
  %758 = vmatprep.subr.mxu0 %v417
  %759 = vmatpush1.msra.mxu0 %v416
  %760 = vmatprep.subr.mxu0 %v413
  %761 = vmatpush1.msra.mxu0 %v412
  %762 = vmatprep.subr.mxu0 %v409
  %763 = vmatpush1.msra.mxu0 %v408
  %764 = vmatprep.subr.mxu0 %v405
  %765 = vmatpush1.msra.mxu0 %v404
  %766 = vmatprep.subr.mxu0 %v401
  %767 = vmatpush1.msra.mxu0 %v400
  %768 = vmatprep.subr.mxu0 %v397
  %769 = vmatpush1.msra.mxu0 %v396
  %770 = vmatprep.subr.mxu0 %v393
  %771 = vmatpush1.msra.mxu0 %v392
  %772 = vmatprep.subr.mxu0 %v389
  %773 = vmatpush1.msra.mxu0 %v388
  %774 = vmatprep.subr.mxu0 %v385
  %775 = vmatpush1.msra.mxu0 %v384
  %776 = vmatprep.subr.mxu0 %v381
  %777 = vmatpush1.msra.mxu0 %v380
  %778 = vmatprep.subr.mxu0 %v377
  %779 = vmatpush1.msra.mxu0 %v376
  %780 = vmatprep.subr.mxu0 %v373
  %781 = vmatpush1.msra.mxu0 %v372
  %782 = vmatprep.subr.mxu0 %v369
  %783 = vmatpush1.msra.mxu0 %v368
  %784 = vmatprep.subr.mxu0 %v365
  %785 = vmatpush1.msra.mxu0 %v364
  %786 = vmatprep.subr.mxu0 %v361
  %787 = vmatpush1.msra.mxu0 %v360
  %788 = vmatprep.subr.mxu0 %v357
  %789 = vmatpush1.msra.mxu0 %v356
  %790 = vmatprep.subr.mxu0 0.0
  %791 = vmatpush2.msra.mxu0 0.0
  %792 = vmatprep.subr.mxu0 0.0
  %793 = vmatpush2.msra.mxu0 0.0
  %794 = vmatprep.subr.mxu0 0.0
  %795 = vmatpush2.msra.mxu0 0.0
  %796 = vmatprep.subr.mxu0 0.0
  %797 = vmatpush2.msra.mxu0 0.0
  %798 = vmatprep.subr.mxu0 0.0
  %799 = vmatpush2.msra.mxu0 0.0
  %800 = vmatprep.subr.mxu0 0.0
  %801 = vmatpush2.msra.mxu0 0.0
  %802 = vmatprep.subr.mxu0 0.0
  %803 = vmatpush2.msra.mxu0 0.0
  %804 = vmatprep.subr.mxu0 0.0
  %805 = vmatpush2.msra.mxu0 0.0
  %806 = vmatprep.subr.mxu0 0.0
  %807 = vmatpush2.msra.mxu0 0.0
  %808 = vmatprep.subr.mxu0 0.0
  %809 = vmatpush2.msra.mxu0 0.0
  %810 = vmatprep.subr.mxu0 0.0
  %811 = vmatpush2.msra.mxu0 0.0
  %812 = vmatprep.subr.mxu0 0.0
  %813 = vmatpush2.msra.mxu0 0.0
  %814 = vmatprep.subr.mxu0 0.0
  %815 = vmatpush2.msra.mxu0 0.0
  %816 = vmatprep.subr.mxu0 0.0
  %817 = vmatpush2.msra.mxu0 0.0
  %818 = vmatprep.subr.mxu0 0.0
  %819 = vmatpush2.msra.mxu0 0.0
  %820 = vmatprep.subr.mxu0 0.0
  %821 = vmatpush2.msra.mxu0 0.0
  %822 = vmatprep.mubr.f32.mxu0 0.0
  %823 = vmatmul.mubr.f32.gmra.mxu0 %v752
  %v824 = vpop.f32.mrf.mxu0
  %v825 = vadd.f32 0.0, %v824
  %v826 = vpop.f32.mrf.mxu0
  %v827 = vadd.f32 0.0, %v826
  %828 = vdwg.mxu0
  %829 = vmatprep.subr.mxu0 %v419
  %830 = vmatpush1.msra.mxu0 %v418
  %831 = vmatprep.subr.mxu0 %v415
  %832 = vmatpush1.msra.mxu0 %v414
  %833 = vmatprep.subr.mxu0 %v411
  %834 = vmatpush1.msra.mxu0 %v410
  %835 = vmatprep.subr.mxu0 %v407
  %836 = vmatpush1.msra.mxu0 %v406
  %837 = vmatprep.subr.mxu0 %v403
  %838 = vmatpush1.msra.mxu0 %v402
  %839 = vmatprep.subr.mxu0 %v399
  %840 = vmatpush1.msra.mxu0 %v398
  %841 = vmatprep.subr.mxu0 %v395
  %842 = vmatpush1.msra.mxu0 %v394
  %843 = vmatprep.subr.mxu0 %v391
  %844 = vmatpush1.msra.mxu0 %v390
  %845 = vmatprep.subr.mxu0 %v387
  %846 = vmatpush1.msra.mxu0 %v386
  %847 = vmatprep.subr.mxu0 %v383
  %848 = vmatpush1.msra.mxu0 %v382
  %849 = vmatprep.subr.mxu0 %v379
  %850 = vmatpush1.msra.mxu0 %v378
  %851 = vmatprep.subr.mxu0 %v375
  %852 = vmatpush1.msra.mxu0 %v374
  %853 = vmatprep.subr.mxu0 %v371
  %854 = vmatpush1.msra.mxu0 %v370
  %855 = vmatprep.subr.mxu0 %v367
  %856 = vmatpush1.msra.mxu0 %v366
  %857 = vmatprep.subr.mxu0 %v363
  %858 = vmatpush1.msra.mxu0 %v362
  %859 = vmatprep.subr.mxu0 %v359
  %860 = vmatpush1.msra.mxu0 %v358
  %861 = vmatprep.subr.mxu0 0.0
  %862 = vmatpush2.msra.mxu0 0.0
  %863 = vmatprep.subr.mxu0 0.0
  %864 = vmatpush2.msra.mxu0 0.0
  %865 = vmatprep.subr.mxu0 0.0
  %866 = vmatpush2.msra.mxu0 0.0
  %867 = vmatprep.subr.mxu0 0.0
  %868 = vmatpush2.msra.mxu0 0.0
  %869 = vmatprep.subr.mxu0 0.0
  %870 = vmatpush2.msra.mxu0 0.0
  %871 = vmatprep.subr.mxu0 0.0
  %872 = vmatpush2.msra.mxu0 0.0
  %873 = vmatprep.subr.mxu0 0.0
  %874 = vmatpush2.msra.mxu0 0.0
  %875 = vmatprep.subr.mxu0 0.0
  %876 = vmatpush2.msra.mxu0 0.0
  %877 = vmatprep.subr.mxu0 0.0
  %878 = vmatpush2.msra.mxu0 0.0
  %879 = vmatprep.subr.mxu0 0.0
  %880 = vmatpush2.msra.mxu0 0.0
  %881 = vmatprep.subr.mxu0 0.0
  %882 = vmatpush2.msra.mxu0 0.0
  %883 = vmatprep.subr.mxu0 0.0
  %884 = vmatpush2.msra.mxu0 0.0
  %885 = vmatprep.subr.mxu0 0.0
  %886 = vmatpush2.msra.mxu0 0.0
  %887 = vmatprep.subr.mxu0 0.0
  %888 = vmatpush2.msra.mxu0 0.0
  %889 = vmatprep.subr.mxu0 0.0
  %890 = vmatpush2.msra.mxu0 0.0
  %891 = vmatprep.subr.mxu0 0.0
  %892 = vmatpush2.msra.mxu0 0.0
  %893 = vmatprep.mubr.f32.mxu0 0.0
  %894 = vmatmul.mubr.f32.gmra.mxu0 %v752
  %v895 = vpop.f32.mrf.mxu0
  %v896 = vadd.f32 0.0, %v895
  %v897 = vpop.f32.mrf.mxu0
  %v898 = vadd.f32 0.0, %v897
  %899 = vdwg.mxu0
  %v900 = vadd.f32 %v754, %v825
  %v901 = vadd.f32 %v755, %v827
  %v902 = vadd.f32 %v756, %v896
  %v903 = vadd.f32 %v757, %v898
  %v904 = vmul.f32 %v900, 0.5
  %v905 = vtanh.pop %v904
  %v906 = vmul.f32 %v905, 0.5
  %v907 = vadd.f32 %v906, 0.5
  %v908 = vmul.f32 %v901, 0.5
  %v909 = vtanh.pop %v908
  %v910 = vmul.f32 %v909, 0.5
  %v911 = vadd.f32 %v910, 0.5
  %v912 = vtanh.pop %v902
  %v913 = vmul.f32 %v903, 0.5
  %v914 = vtanh.pop %v913
  %v915 = vmul.f32 %v914, 0.5
  %v916 = vadd.f32 %v915, 0.5
  %v917 = vmul.f32 %v911, %v750
  %v918 = vmul.f32 %v907, %v912
  %v919 = vadd.f32 %v917, %v918
  %v920 = vtanh.pop %v919
  %v921 = vmul.f32 %v916, %v920
  %s922 = scalar_lea.vmem [#allocation2], 96
  %v923 = vld [vmem:[%s922] sm:$0xff]
  %v924 = vld [vmem:[%s922 + $0x8] sm:$0xff]
  %v925 = vld [vmem:[%s922 + $0x10] sm:$0xff]
  %v926 = vld [vmem:[%s922 + $0x18] sm:$0xff]
  %927 = vmatprep.subr.mxu0 %v417
  %928 = vmatpush1.msra.mxu0 %v416
  %929 = vmatprep.subr.mxu0 %v413
  %930 = vmatpush1.msra.mxu0 %v412
  %931 = vmatprep.subr.mxu0 %v409
  %932 = vmatpush1.msra.mxu0 %v408
  %933 = vmatprep.subr.mxu0 %v405
  %934 = vmatpush1.msra.mxu0 %v404
  %935 = vmatprep.subr.mxu0 %v401
  %936 = vmatpush1.msra.mxu0 %v400
  %937 = vmatprep.subr.mxu0 %v397
  %938 = vmatpush1.msra.mxu0 %v396
  %939 = vmatprep.subr.mxu0 %v393
  %940 = vmatpush1.msra.mxu0 %v392
  %941 = vmatprep.subr.mxu0 %v389
  %942 = vmatpush1.msra.mxu0 %v388
  %943 = vmatprep.subr.mxu0 %v385
  %944 = vmatpush1.msra.mxu0 %v384
  %945 = vmatprep.subr.mxu0 %v381
  %946 = vmatpush1.msra.mxu0 %v380
  %947 = vmatprep.subr.mxu0 %v377
  %948 = vmatpush1.msra.mxu0 %v376
  %949 = vmatprep.subr.mxu0 %v373
  %950 = vmatpush1.msra.mxu0 %v372
  %951 = vmatprep.subr.mxu0 %v369
  %952 = vmatpush1.msra.mxu0 %v368
  %953 = vmatprep.subr.mxu0 %v365
  %954 = vmatpush1.msra.mxu0 %v364
  %955 = vmatprep.subr.mxu0 %v361
  %956 = vmatpush1.msra.mxu0 %v360
  %957 = vmatprep.subr.mxu0 %v357
  %958 = vmatpush1.msra.mxu0 %v356
  %959 = vmatprep.subr.mxu0 0.0
  %960 = vmatpush2.msra.mxu0 0.0
  %961 = vmatprep.subr.mxu0 0.0
  %962 = vmatpush2.msra.mxu0 0.0
  %963 = vmatprep.subr.mxu0 0.0
  %964 = vmatpush2.msra.mxu0 0.0
  %965 = vmatprep.subr.mxu0 0.0
  %966 = vmatpush2.msra.mxu0 0.0
  %967 = vmatprep.subr.mxu0 0.0
  %968 = vmatpush2.msra.mxu0 0.0
  %969 = vmatprep.subr.mxu0 0.0
  %970 = vmatpush2.msra.mxu0 0.0
  %971 = vmatprep.subr.mxu0 0.0
  %972 = vmatpush2.msra.mxu0 0.0
  %973 = vmatprep.subr.mxu0 0.0
  %974 = vmatpush2.msra.mxu0 0.0
  %975 = vmatprep.subr.mxu0 0.0
  %976 = vmatpush2.msra.mxu0 0.0
  %977 = vmatprep.subr.mxu0 0.0
  %978 = vmatpush2.msra.mxu0 0.0
  %979 = vmatprep.subr.mxu0 0.0
  %980 = vmatpush2.msra.mxu0 0.0
  %981 = vmatprep.subr.mxu0 0.0
  %982 = vmatpush2.msra.mxu0 0.0
  %983 = vmatprep.subr.mxu0 0.0
  %984 = vmatpush2.msra.mxu0 0.0
  %985 = vmatprep.subr.mxu0 0.0
  %986 = vmatpush2.msra.mxu0 0.0
  %987 = vmatprep.subr.mxu0 0.0
  %988 = vmatpush2.msra.mxu0 0.0
  %989 = vmatprep.subr.mxu0 0.0
  %990 = vmatpush2.msra.mxu0 0.0
  %991 = vmatprep.mubr.f32.mxu0 0.0
  %992 = vmatmul.mubr.f32.gmra.mxu0 %v921
  %v993 = vpop.f32.mrf.mxu0
  %v994 = vadd.f32 0.0, %v993
  %v995 = vpop.f32.mrf.mxu0
  %v996 = vadd.f32 0.0, %v995
  %997 = vdwg.mxu0
  %998 = vmatprep.subr.mxu0 %v419
  %999 = vmatpush1.msra.mxu0 %v418
  %1000 = vmatprep.subr.mxu0 %v415
  %1001 = vmatpush1.msra.mxu0 %v414
  %1002 = vmatprep.subr.mxu0 %v411
  %1003 = vmatpush1.msra.mxu0 %v410
  %1004 = vmatprep.subr.mxu0 %v407
  %1005 = vmatpush1.msra.mxu0 %v406
  %1006 = vmatprep.subr.mxu0 %v403
  %1007 = vmatpush1.msra.mxu0 %v402
  %1008 = vmatprep.subr.mxu0 %v399
  %1009 = vmatpush1.msra.mxu0 %v398
  %1010 = vmatprep.subr.mxu0 %v395
  %1011 = vmatpush1.msra.mxu0 %v394
  %1012 = vmatprep.subr.mxu0 %v391
  %1013 = vmatpush1.msra.mxu0 %v390
  %1014 = vmatprep.subr.mxu0 %v387
  %1015 = vmatpush1.msra.mxu0 %v386
  %1016 = vmatprep.subr.mxu0 %v383
  %1017 = vmatpush1.msra.mxu0 %v382
  %1018 = vmatprep.subr.mxu0 %v379
  %1019 = vmatpush1.msra.mxu0 %v378
  %1020 = vmatprep.subr.mxu0 %v375
  %1021 = vmatpush1.msra.mxu0 %v374
  %1022 = vmatprep.subr.mxu0 %v371
  %1023 = vmatpush1.msra.mxu0 %v370
  %1024 = vmatprep.subr.mxu0 %v367
  %1025 = vmatpush1.msra.mxu0 %v366
  %1026 = vmatprep.subr.mxu0 %v363
  %1027 = vmatpush1.msra.mxu0 %v362
  %1028 = vmatprep.subr.mxu0 %v359
  %1029 = vmatpush1.msra.mxu0 %v358
  %1030 = vmatprep.subr.mxu0 0.0
  %1031 = vmatpush2.msra.mxu0 0.0
  %1032 = vmatprep.subr.mxu0 0.0
  %1033 = vmatpush2.msra.mxu0 0.0
  %1034 = vmatprep.subr.mxu0 0.0
  %1035 = vmatpush2.msra.mxu0 0.0
  %1036 = vmatprep.subr.mxu0 0.0
  %1037 = vmatpush2.msra.mxu0 0.0
  %1038 = vmatprep.subr.mxu0 0.0
  %1039 = vmatpush2.msra.mxu0 0.0
  %1040 = vmatprep.subr.mxu0 0.0
  %1041 = vmatpush2.msra.mxu0 0.0
  %1042 = vmatprep.subr.mxu0 0.0
  %1043 = vmatpush2.msra.mxu0 0.0
  %1044 = vmatprep.subr.mxu0 0.0
  %1045 = vmatpush2.msra.mxu0 0.0
  %1046 = vmatprep.subr.mxu0 0.0
  %1047 = vmatpush2.msra.mxu0 0.0
  %1048 = vmatprep.subr.mxu0 0.0
  %1049 = vmatpush2.msra.mxu0 0.0
  %1050 = vmatprep.subr.mxu0 0.0
  %1051 = vmatpush2.msra.mxu0 0.0
  %1052 = vmatprep.subr.mxu0 0.0
  %1053 = vmatpush2.msra.mxu0 0.0
  %1054 = vmatprep.subr.mxu0 0.0
  %1055 = vmatpush2.msra.mxu0 0.0
  %1056 = vmatprep.subr.mxu0 0.0
  %1057 = vmatpush2.msra.mxu0 0.0
  %1058 = vmatprep.subr.mxu0 0.0
  %1059 = vmatpush2.msra.mxu0 0.0
  %1060 = vmatprep.subr.mxu0 0.0
  %1061 = vmatpush2.msra.mxu0 0.0
  %1062 = vmatprep.mubr.f32.mxu0 0.0
  %1063 = vmatmul.mubr.f32.gmra.mxu0 %v921
  %v1064 = vpop.f32.mrf.mxu0
  %v1065 = vadd.f32 0.0, %v1064
  %v1066 = vpop.f32.mrf.mxu0
  %v1067 = vadd.f32 0.0, %v1066
  %1068 = vdwg.mxu0
  %v1069 = vadd.f32 %v923, %v994
  %v1070 = vadd.f32 %v924, %v996
  %v1071 = vadd.f32 %v925, %v1065
  %v1072 = vadd.f32 %v926, %v1067
  %v1073 = vmul.f32 %v1069, 0.5
  %v1074 = vtanh.pop %v1073
  %v1075 = vmul.f32 %v1074, 0.5
  %v1076 = vadd.f32 %v1075, 0.5
  %v1077 = vmul.f32 %v1070, 0.5
  %v1078 = vtanh.pop %v1077
  %v1079 = vmul.f32 %v1078, 0.5
  %v1080 = vadd.f32 %v1079, 0.5
  %v1081 = vtanh.pop %v1071
  %v1082 = vmul.f32 %v1072, 0.5
  %v1083 = vtanh.pop %v1082
  %v1084 = vmul.f32 %v1083, 0.5
  %v1085 = vadd.f32 %v1084, 0.5
  %v1086 = vmul.f32 %v1080, %v919
  %v1087 = vmul.f32 %v1076, %v1081
  %v1088 = vadd.f32 %v1086, %v1087
  %v1089 = vtanh.pop %v1088
  %v1090 = vmul.f32 %v1085, %v1089
  %s1091 = scalar_lea.vmem [#allocation2], 128
  %v1092 = vld [vmem:[%s1091] sm:$0xff]
  %v1093 = vld [vmem:[%s1091 + $0x8] sm:$0xff]
  %v1094 = vld [vmem:[%s1091 + $0x10] sm:$0xff]
  %v1095 = vld [vmem:[%s1091 + $0x18] sm:$0xff]
  %1096 = vmatprep.subr.mxu0 %v417
  %1097 = vmatpush1.msra.mxu0 %v416
  %1098 = vmatprep.subr.mxu0 %v413
  %1099 = vmatpush1.msra.mxu0 %v412
  %1100 = vmatprep.subr.mxu0 %v409
  %1101 = vmatpush1.msra.mxu0 %v408
  %1102 = vmatprep.subr.mxu0 %v405
  %1103 = vmatpush1.msra.mxu0 %v404
  %1104 = vmatprep.subr.mxu0 %v401
  %1105 = vmatpush1.msra.mxu0 %v400
  %1106 = vmatprep.subr.mxu0 %v397
  %1107 = vmatpush1.msra.mxu0 %v396
  %1108 = vmatprep.subr.mxu0 %v393
  %1109 = vmatpush1.msra.mxu0 %v392
  %1110 = vmatprep.subr.mxu0 %v389
  %1111 = vmatpush1.msra.mxu0 %v388
  %1112 = vmatprep.subr.mxu0 %v385
  %1113 = vmatpush1.msra.mxu0 %v384
  %1114 = vmatprep.subr.mxu0 %v381
  %1115 = vmatpush1.msra.mxu0 %v380
  %1116 = vmatprep.subr.mxu0 %v377
  %1117 = vmatpush1.msra.mxu0 %v376
  %1118 = vmatprep.subr.mxu0 %v373
  %1119 = vmatpush1.msra.mxu0 %v372
  %1120 = vmatprep.subr.mxu0 %v369
  %1121 = vmatpush1.msra.mxu0 %v368
  %1122 = vmatprep.subr.mxu0 %v365
  %1123 = vmatpush1.msra.mxu0 %v364
  %1124 = vmatprep.subr.mxu0 %v361
  %1125 = vmatpush1.msra.mxu0 %v360
  %1126 = vmatprep.subr.mxu0 %v357
  %1127 = vmatpush1.msra.mxu0 %v356
  %1128 = vmatprep.subr.mxu0 0.0
  %1129 = vmatpush2.msra.mxu0 0.0
  %1130 = vmatprep.subr.mxu0 0.0
  %1131 = vmatpush2.msra.mxu0 0.0
  %1132 = vmatprep.subr.mxu0 0.0
  %1133 = vmatpush2.msra.mxu0 0.0
  %1134 = vmatprep.subr.mxu0 0.0
  %1135 = vmatpush2.msra.mxu0 0.0
  %1136 = vmatprep.subr.mxu0 0.0
  %1137 = vmatpush2.msra.mxu0 0.0
  %1138 = vmatprep.subr.mxu0 0.0
  %1139 = vmatpush2.msra.mxu0 0.0
  %1140 = vmatprep.subr.mxu0 0.0
  %1141 = vmatpush2.msra.mxu0 0.0
  %1142 = vmatprep.subr.mxu0 0.0
  %1143 = vmatpush2.msra.mxu0 0.0
  %1144 = vmatprep.subr.mxu0 0.0
  %1145 = vmatpush2.msra.mxu0 0.0
  %1146 = vmatprep.subr.mxu0 0.0
  %1147 = vmatpush2.msra.mxu0 0.0
  %1148 = vmatprep.subr.mxu0 0.0
  %1149 = vmatpush2.msra.mxu0 0.0
  %1150 = vmatprep.subr.mxu0 0.0
  %1151 = vmatpush2.msra.mxu0 0.0
  %1152 = vmatprep.subr.mxu0 0.0
  %1153 = vmatpush2.msra.mxu0 0.0
  %1154 = vmatprep.subr.mxu0 0.0
  %1155 = vmatpush2.msra.mxu0 0.0
  %1156 = vmatprep.subr.mxu0 0.0
  %1157 = vmatpush2.msra.mxu0 0.0
  %1158 = vmatprep.subr.mxu0 0.0
  %1159 = vmatpush2.msra.mxu0 0.0
  %1160 = vmatprep.mubr.f32.mxu0 0.0
  %1161 = vmatmul.mubr.f32.gmra.mxu0 %v1090
  %v1162 = vpop.f32.mrf.mxu0
  %v1163 = vadd.f32 0.0, %v1162
  %v1164 = vpop.f32.mrf.mxu0
  %v1165 = vadd.f32 0.0, %v1164
  %1166 = vdwg.mxu0
  %1167 = vmatprep.subr.mxu0 %v419
  %1168 = vmatpush1.msra.mxu0 %v418
  %1169 = vmatprep.subr.mxu0 %v415
  %1170 = vmatpush1.msra.mxu0 %v414
  %1171 = vmatprep.subr.mxu0 %v411
  %1172 = vmatpush1.msra.mxu0 %v410
  %1173 = vmatprep.subr.mxu0 %v407
  %1174 = vmatpush1.msra.mxu0 %v406
  %1175 = vmatprep.subr.mxu0 %v403
  %1176 = vmatpush1.msra.mxu0 %v402
  %1177 = vmatprep.subr.mxu0 %v399
  %1178 = vmatpush1.msra.mxu0 %v398
  %1179 = vmatprep.subr.mxu0 %v395
  %1180 = vmatpush1.msra.mxu0 %v394
  %1181 = vmatprep.subr.mxu0 %v391
  %1182 = vmatpush1.msra.mxu0 %v390
  %1183 = vmatprep.subr.mxu0 %v387
  %1184 = vmatpush1.msra.mxu0 %v386
  %1185 = vmatprep.subr.mxu0 %v383
  %1186 = vmatpush1.msra.mxu0 %v382
  %1187 = vmatprep.subr.mxu0 %v379
  %1188 = vmatpush1.msra.mxu0 %v378
  %1189 = vmatprep.subr.mxu0 %v375
  %1190 = vmatpush1.msra.mxu0 %v374
  %1191 = vmatprep.subr.mxu0 %v371
  %1192 = vmatpush1.msra.mxu0 %v370
  %1193 = vmatprep.subr.mxu0 %v367
  %1194 = vmatpush1.msra.mxu0 %v366
  %1195 = vmatprep.subr.mxu0 %v363
  %1196 = vmatpush1.msra.mxu0 %v362
  %1197 = vmatprep.subr.mxu0 %v359
  %1198 = vmatpush1.msra.mxu0 %v358
  %1199 = vmatprep.subr.mxu0 0.0
  %1200 = vmatpush2.msra.mxu0 0.0
  %1201 = vmatprep.subr.mxu0 0.0
  %1202 = vmatpush2.msra.mxu0 0.0
  %1203 = vmatprep.subr.mxu0 0.0
  %1204 = vmatpush2.msra.mxu0 0.0
  %1205 = vmatprep.subr.mxu0 0.0
  %1206 = vmatpush2.msra.mxu0 0.0
  %1207 = vmatprep.subr.mxu0 0.0
  %1208 = vmatpush2.msra.mxu0 0.0
  %1209 = vmatprep.subr.mxu0 0.0
  %1210 = vmatpush2.msra.mxu0 0.0
  %1211 = vmatprep.subr.mxu0 0.0
  %1212 = vmatpush2.msra.mxu0 0.0
  %1213 = vmatprep.subr.mxu0 0.0
  %1214 = vmatpush2.msra.mxu0 0.0
  %1215 = vmatprep.subr.mxu0 0.0
  %1216 = vmatpush2.msra.mxu0 0.0
  %1217 = vmatprep.subr.mxu0 0.0
  %1218 = vmatpush2.msra.mxu0 0.0
  %1219 = vmatprep.subr.mxu0 0.0
  %1220 = vmatpush2.msra.mxu0 0.0
  %1221 = vmatprep.subr.mxu0 0.0
  %1222 = vmatpush2.msra.mxu0 0.0
  %1223 = vmatprep.subr.mxu0 0.0
  %1224 = vmatpush2.msra.mxu0 0.0
  %1225 = vmatprep.subr.mxu0 0.0
  %1226 = vmatpush2.msra.mxu0 0.0
  %1227 = vmatprep.subr.mxu0 0.0
  %1228 = vmatpush2.msra.mxu0 0.0
  %1229 = vmatprep.subr.mxu0 0.0
  %1230 = vmatpush2.msra.mxu0 0.0
  %1231 = vmatprep.mubr.f32.mxu0 0.0
  %1232 = vmatmul.mubr.f32.gmra.mxu0 %v1090
  %v1233 = vpop.f32.mrf.mxu0
  %v1234 = vadd.f32 0.0, %v1233
  %v1235 = vpop.f32.mrf.mxu0
  %v1236 = vadd.f32 0.0, %v1235
  %1237 = vdwg.mxu0
  %v1238 = vadd.f32 %v1092, %v1163
  %v1239 = vadd.f32 %v1093, %v1165
  %v1240 = vadd.f32 %v1094, %v1234
  %v1241 = vadd.f32 %v1095, %v1236
  %v1242 = vmul.f32 %v1238, 0.5
  %v1243 = vtanh.pop %v1242
  %v1244 = vmul.f32 %v1243, 0.5
  %v1245 = vadd.f32 %v1244, 0.5
  %v1246 = vmul.f32 %v1239, 0.5
  %v1247 = vtanh.pop %v1246
  %v1248 = vmul.f32 %v1247, 0.5
  %v1249 = vadd.f32 %v1248, 0.5
  %v1250 = vtanh.pop %v1240
  %v1251 = vmul.f32 %v1241, 0.5
  %v1252 = vtanh.pop %v1251
  %v1253 = vmul.f32 %v1252, 0.5
  %v1254 = vadd.f32 %v1253, 0.5
  %v1255 = vmul.f32 %v1249, %v1088
  %v1256 = vmul.f32 %v1245, %v1250
  %v1257 = vadd.f32 %v1255, %v1256
  %v1258 = vtanh.pop %v1257
  %v1259 = vmul.f32 %v1254, %v1258
  %s1260 = scalar_lea.vmem [#allocation2], 160
  %v1261 = vld [vmem:[%s1260] sm:$0xff]
  %v1262 = vld [vmem:[%s1260 + $0x8] sm:$0xff]
  %v1263 = vld [vmem:[%s1260 + $0x10] sm:$0xff]
  %v1264 = vld [vmem:[%s1260 + $0x18] sm:$0xff]
  %1265 = vmatprep.subr.mxu0 %v417
  %1266 = vmatpush1.msra.mxu0 %v416
  %1267 = vmatprep.subr.mxu0 %v413
  %1268 = vmatpush1.msra.mxu0 %v412
  %1269 = vmatprep.subr.mxu0 %v409
  %1270 = vmatpush1.msra.mxu0 %v408
  %1271 = vmatprep.subr.mxu0 %v405
  %1272 = vmatpush1.msra.mxu0 %v404
  %1273 = vmatprep.subr.mxu0 %v401
  %1274 = vmatpush1.msra.mxu0 %v400
  %1275 = vmatprep.subr.mxu0 %v397
  %1276 = vmatpush1.msra.mxu0 %v396
  %1277 = vmatprep.subr.mxu0 %v393
  %1278 = vmatpush1.msra.mxu0 %v392
  %1279 = vmatprep.subr.mxu0 %v389
  %1280 = vmatpush1.msra.mxu0 %v388
  %1281 = vmatprep.subr.mxu0 %v385
  %1282 = vmatpush1.msra.mxu0 %v384
  %1283 = vmatprep.subr.mxu0 %v381
  %1284 = vmatpush1.msra.mxu0 %v380
  %1285 = vmatprep.subr.mxu0 %v377
  %1286 = vmatpush1.msra.mxu0 %v376
  %1287 = vmatprep.subr.mxu0 %v373
  %1288 = vmatpush1.msra.mxu0 %v372
  %1289 = vmatprep.subr.mxu0 %v369
  %1290 = vmatpush1.msra.mxu0 %v368
  %1291 = vmatprep.subr.mxu0 %v365
  %1292 = vmatpush1.msra.mxu0 %v364
  %1293 = vmatprep.subr.mxu0 %v361
  %1294 = vmatpush1.msra.mxu0 %v360
  %1295 = vmatprep.subr.mxu0 %v357
  %1296 = vmatpush1.msra.mxu0 %v356
  %1297 = vmatprep.subr.mxu0 0.0
  %1298 = vmatpush2.msra.mxu0 0.0
  %1299 = vmatprep.subr.mxu0 0.0
  %1300 = vmatpush2.msra.mxu0 0.0
  %1301 = vmatprep.subr.mxu0 0.0
  %1302 = vmatpush2.msra.mxu0 0.0
  %1303 = vmatprep.subr.mxu0 0.0
  %1304 = vmatpush2.msra.mxu0 0.0
  %1305 = vmatprep.subr.mxu0 0.0
  %1306 = vmatpush2.msra.mxu0 0.0
  %1307 = vmatprep.subr.mxu0 0.0
  %1308 = vmatpush2.msra.mxu0 0.0
  %1309 = vmatprep.subr.mxu0 0.0
  %1310 = vmatpush2.msra.mxu0 0.0
  %1311 = vmatprep.subr.mxu0 0.0
  %1312 = vmatpush2.msra.mxu0 0.0
  %1313 = vmatprep.subr.mxu0 0.0
  %1314 = vmatpush2.msra.mxu0 0.0
  %1315 = vmatprep.subr.mxu0 0.0
  %1316 = vmatpush2.msra.mxu0 0.0
  %1317 = vmatprep.subr.mxu0 0.0
  %1318 = vmatpush2.msra.mxu0 0.0
  %1319 = vmatprep.subr.mxu0 0.0
  %1320 = vmatpush2.msra.mxu0 0.0
  %1321 = vmatprep.subr.mxu0 0.0
  %1322 = vmatpush2.msra.mxu0 0.0
  %1323 = vmatprep.subr.mxu0 0.0
  %1324 = vmatpush2.msra.mxu0 0.0
  %1325 = vmatprep.subr.mxu0 0.0
  %1326 = vmatpush2.msra.mxu0 0.0
  %1327 = vmatprep.subr.mxu0 0.0
  %1328 = vmatpush2.msra.mxu0 0.0
  %1329 = vmatprep.mubr.f32.mxu0 0.0
  %1330 = vmatmul.mubr.f32.gmra.mxu0 %v1259
  %v1331 = vpop.f32.mrf.mxu0
  %v1332 = vadd.f32 0.0, %v1331
  %v1333 = vpop.f32.mrf.mxu0
  %v1334 = vadd.f32 0.0, %v1333
  %1335 = vdwg.mxu0
  %1336 = vmatprep.subr.mxu0 %v419
  %1337 = vmatpush1.msra.mxu0 %v418
  %1338 = vmatprep.subr.mxu0 %v415
  %1339 = vmatpush1.msra.mxu0 %v414
  %1340 = vmatprep.subr.mxu0 %v411
  %1341 = vmatpush1.msra.mxu0 %v410
  %1342 = vmatprep.subr.mxu0 %v407
  %1343 = vmatpush1.msra.mxu0 %v406
  %1344 = vmatprep.subr.mxu0 %v403
  %1345 = vmatpush1.msra.mxu0 %v402
  %1346 = vmatprep.subr.mxu0 %v399
  %1347 = vmatpush1.msra.mxu0 %v398
  %1348 = vmatprep.subr.mxu0 %v395
  %1349 = vmatpush1.msra.mxu0 %v394
  %1350 = vmatprep.subr.mxu0 %v391
  %1351 = vmatpush1.msra.mxu0 %v390
  %1352 = vmatprep.subr.mxu0 %v387
  %1353 = vmatpush1.msra.mxu0 %v386
  %1354 = vmatprep.subr.mxu0 %v383
  %1355 = vmatpush1.msra.mxu0 %v382
  %1356 = vmatprep.subr.mxu0 %v379
  %1357 = vmatpush1.msra.mxu0 %v378
  %1358 = vmatprep.subr.mxu0 %v375
  %1359 = vmatpush1.msra.mxu0 %v374
  %1360 = vmatprep.subr.mxu0 %v371
  %1361 = vmatpush1.msra.mxu0 %v370
  %1362 = vmatprep.subr.mxu0 %v367
  %1363 = vmatpush1.msra.mxu0 %v366
  %1364 = vmatprep.subr.mxu0 %v363
  %1365 = vmatpush1.msra.mxu0 %v362
  %1366 = vmatprep.subr.mxu0 %v359
  %1367 = vmatpush1.msra.mxu0 %v358
  %1368 = vmatprep.subr.mxu0 0.0
  %1369 = vmatpush2.msra.mxu0 0.0
  %1370 = vmatprep.subr.mxu0 0.0
  %1371 = vmatpush2.msra.mxu0 0.0
  %1372 = vmatprep.subr.mxu0 0.0
  %1373 = vmatpush2.msra.mxu0 0.0
  %1374 = vmatprep.subr.mxu0 0.0
  %1375 = vmatpush2.msra.mxu0 0.0
  %1376 = vmatprep.subr.mxu0 0.0
  %1377 = vmatpush2.msra.mxu0 0.0
  %1378 = vmatprep.subr.mxu0 0.0
  %1379 = vmatpush2.msra.mxu0 0.0
  %1380 = vmatprep.subr.mxu0 0.0
  %1381 = vmatpush2.msra.mxu0 0.0
  %1382 = vmatprep.subr.mxu0 0.0
  %1383 = vmatpush2.msra.mxu0 0.0
  %1384 = vmatprep.subr.mxu0 0.0
  %1385 = vmatpush2.msra.mxu0 0.0
  %1386 = vmatprep.subr.mxu0 0.0
  %1387 = vmatpush2.msra.mxu0 0.0
  %1388 = vmatprep.subr.mxu0 0.0
  %1389 = vmatpush2.msra.mxu0 0.0
  %1390 = vmatprep.subr.mxu0 0.0
  %1391 = vmatpush2.msra.mxu0 0.0
  %1392 = vmatprep.subr.mxu0 0.0
  %1393 = vmatpush2.msra.mxu0 0.0
  %1394 = vmatprep.subr.mxu0 0.0
  %1395 = vmatpush2.msra.mxu0 0.0
  %1396 = vmatprep.subr.mxu0 0.0
  %1397 = vmatpush2.msra.mxu0 0.0
  %1398 = vmatprep.subr.mxu0 0.0
  %1399 = vmatpush2.msra.mxu0 0.0
  %1400 = vmatprep.mubr.f32.mxu0 0.0
  %1401 = vmatmul.mubr.f32.gmra.mxu0 %v1259
  %v1402 = vpop.f32.mrf.mxu0
  %v1403 = vadd.f32 0.0, %v1402
  %v1404 = vpop.f32.mrf.mxu0
  %v1405 = vadd.f32 0.0, %v1404
  %1406 = vdwg.mxu0
  %v1407 = vadd.f32 %v1261, %v1332
  %v1408 = vadd.f32 %v1262, %v1334
  %v1409 = vadd.f32 %v1263, %v1403
  %v1410 = vadd.f32 %v1264, %v1405
  %v1411 = vmul.f32 %v1407, 0.5
  %v1412 = vtanh.pop %v1411
  %v1413 = vmul.f32 %v1412, 0.5
  %v1414 = vadd.f32 %v1413, 0.5
  %v1415 = vmul.f32 %v1408, 0.5
  %v1416 = vtanh.pop %v1415
  %v1417 = vmul.f32 %v1416, 0.5
  %v1418 = vadd.f32 %v1417, 0.5
  %v1419 = vtanh.pop %v1409
  %v1420 = vmul.f32 %v1410, 0.5
  %v1421 = vtanh.pop %v1420
  %v1422 = vmul.f32 %v1421, 0.5
  %v1423 = vadd.f32 %v1422, 0.5
  %v1424 = vmul.f32 %v1418, %v1257
  %v1425 = vmul.f32 %v1414, %v1419
  %v1426 = vadd.f32 %v1424, %v1425
  %v1427 = vtanh.pop %v1426
  %v1428 = vmul.f32 %v1423, %v1427
  %s1429 = scalar_lea.vmem [#allocation2], 192
  %v1430 = vld [vmem:[%s1429] sm:$0xff]
  %v1431 = vld [vmem:[%s1429 + $0x8] sm:$0xff]
  %v1432 = vld [vmem:[%s1429 + $0x10] sm:$0xff]
  %v1433 = vld [vmem:[%s1429 + $0x18] sm:$0xff]
  %1434 = vmatprep.subr.mxu0 %v417
  %1435 = vmatpush1.msra.mxu0 %v416
  %1436 = vmatprep.subr.mxu0 %v413
  %1437 = vmatpush1.msra.mxu0 %v412
  %1438 = vmatprep.subr.mxu0 %v409
  %1439 = vmatpush1.msra.mxu0 %v408
  %1440 = vmatprep.subr.mxu0 %v405
  %1441 = vmatpush1.msra.mxu0 %v404
  %1442 = vmatprep.subr.mxu0 %v401
  %1443 = vmatpush1.msra.mxu0 %v400
  %1444 = vmatprep.subr.mxu0 %v397
  %1445 = vmatpush1.msra.mxu0 %v396
  %1446 = vmatprep.subr.mxu0 %v393
  %1447 = vmatpush1.msra.mxu0 %v392
  %1448 = vmatprep.subr.mxu0 %v389
  %1449 = vmatpush1.msra.mxu0 %v388
  %1450 = vmatprep.subr.mxu0 %v385
  %1451 = vmatpush1.msra.mxu0 %v384
  %1452 = vmatprep.subr.mxu0 %v381
  %1453 = vmatpush1.msra.mxu0 %v380
  %1454 = vmatprep.subr.mxu0 %v377
  %1455 = vmatpush1.msra.mxu0 %v376
  %1456 = vmatprep.subr.mxu0 %v373
  %1457 = vmatpush1.msra.mxu0 %v372
  %1458 = vmatprep.subr.mxu0 %v369
  %1459 = vmatpush1.msra.mxu0 %v368
  %1460 = vmatprep.subr.mxu0 %v365
  %1461 = vmatpush1.msra.mxu0 %v364
  %1462 = vmatprep.subr.mxu0 %v361
  %1463 = vmatpush1.msra.mxu0 %v360
  %1464 = vmatprep.subr.mxu0 %v357
  %1465 = vmatpush1.msra.mxu0 %v356
  %1466 = vmatprep.subr.mxu0 0.0
  %1467 = vmatpush2.msra.mxu0 0.0
  %1468 = vmatprep.subr.mxu0 0.0
  %1469 = vmatpush2.msra.mxu0 0.0
  %1470 = vmatprep.subr.mxu0 0.0
  %1471 = vmatpush2.msra.mxu0 0.0
  %1472 = vmatprep.subr.mxu0 0.0
  %1473 = vmatpush2.msra.mxu0 0.0
  %1474 = vmatprep.subr.mxu0 0.0
  %1475 = vmatpush2.msra.mxu0 0.0
  %1476 = vmatprep.subr.mxu0 0.0
  %1477 = vmatpush2.msra.mxu0 0.0
  %1478 = vmatprep.subr.mxu0 0.0
  %1479 = vmatpush2.msra.mxu0 0.0
  %1480 = vmatprep.subr.mxu0 0.0
  %1481 = vmatpush2.msra.mxu0 0.0
  %1482 = vmatprep.subr.mxu0 0.0
  %1483 = vmatpush2.msra.mxu0 0.0
  %1484 = vmatprep.subr.mxu0 0.0
  %1485 = vmatpush2.msra.mxu0 0.0
  %1486 = vmatprep.subr.mxu0 0.0
  %1487 = vmatpush2.msra.mxu0 0.0
  %1488 = vmatprep.subr.mxu0 0.0
  %1489 = vmatpush2.msra.mxu0 0.0
  %1490 = vmatprep.subr.mxu0 0.0
  %1491 = vmatpush2.msra.mxu0 0.0
  %1492 = vmatprep.subr.mxu0 0.0
  %1493 = vmatpush2.msra.mxu0 0.0
  %1494 = vmatprep.subr.mxu0 0.0
  %1495 = vmatpush2.msra.mxu0 0.0
  %1496 = vmatprep.subr.mxu0 0.0
  %1497 = vmatpush2.msra.mxu0 0.0
  %1498 = vmatprep.mubr.f32.mxu0 0.0
  %1499 = vmatmul.mubr.f32.gmra.mxu0 %v1428
  %v1500 = vpop.f32.mrf.mxu0
  %v1501 = vadd.f32 0.0, %v1500
  %v1502 = vpop.f32.mrf.mxu0
  %v1503 = vadd.f32 0.0, %v1502
  %1504 = vdwg.mxu0
  %1505 = vmatprep.subr.mxu0 %v419
  %1506 = vmatpush1.msra.mxu0 %v418
  %1507 = vmatprep.subr.mxu0 %v415
  %1508 = vmatpush1.msra.mxu0 %v414
  %1509 = vmatprep.subr.mxu0 %v411
  %1510 = vmatpush1.msra.mxu0 %v410
  %1511 = vmatprep.subr.mxu0 %v407
  %1512 = vmatpush1.msra.mxu0 %v406
  %1513 = vmatprep.subr.mxu0 %v403
  %1514 = vmatpush1.msra.mxu0 %v402
  %1515 = vmatprep.subr.mxu0 %v399
  %1516 = vmatpush1.msra.mxu0 %v398
  %1517 = vmatprep.subr.mxu0 %v395
  %1518 = vmatpush1.msra.mxu0 %v394
  %1519 = vmatprep.subr.mxu0 %v391
  %1520 = vmatpush1.msra.mxu0 %v390
  %1521 = vmatprep.subr.mxu0 %v387
  %1522 = vmatpush1.msra.mxu0 %v386
  %1523 = vmatprep.subr.mxu0 %v383
  %1524 = vmatpush1.msra.mxu0 %v382
  %1525 = vmatprep.subr.mxu0 %v379
  %1526 = vmatpush1.msra.mxu0 %v378
  %1527 = vmatprep.subr.mxu0 %v375
  %1528 = vmatpush1.msra.mxu0 %v374
  %1529 = vmatprep.subr.mxu0 %v371
  %1530 = vmatpush1.msra.mxu0 %v370
  %1531 = vmatprep.subr.mxu0 %v367
  %1532 = vmatpush1.msra.mxu0 %v366
  %1533 = vmatprep.subr.mxu0 %v363
  %1534 = vmatpush1.msra.mxu0 %v362
  %1535 = vmatprep.subr.mxu0 %v359
  %1536 = vmatpush1.msra.mxu0 %v358
  %1537 = vmatprep.subr.mxu0 0.0
  %1538 = vmatpush2.msra.mxu0 0.0
  %1539 = vmatprep.subr.mxu0 0.0
  %1540 = vmatpush2.msra.mxu0 0.0
  %1541 = vmatprep.subr.mxu0 0.0
  %1542 = vmatpush2.msra.mxu0 0.0
  %1543 = vmatprep.subr.mxu0 0.0
  %1544 = vmatpush2.msra.mxu0 0.0
  %1545 = vmatprep.subr.mxu0 0.0
  %1546 = vmatpush2.msra.mxu0 0.0
  %1547 = vmatprep.subr.mxu0 0.0
  %1548 = vmatpush2.msra.mxu0 0.0
  %1549 = vmatprep.subr.mxu0 0.0
  %1550 = vmatpush2.msra.mxu0 0.0
  %1551 = vmatprep.subr.mxu0 0.0
  %1552 = vmatpush2.msra.mxu0 0.0
  %1553 = vmatprep.subr.mxu0 0.0
  %1554 = vmatpush2.msra.mxu0 0.0
  %1555 = vmatprep.subr.mxu0 0.0
  %1556 = vmatpush2.msra.mxu0 0.0
  %1557 = vmatprep.subr.mxu0 0.0
  %1558 = vmatpush2.msra.mxu0 0.0
  %1559 = vmatprep.subr.mxu0 0.0
  %1560 = vmatpush2.msra.mxu0 0.0
  %1561 = vmatprep.subr.mxu0 0.0
  %1562 = vmatpush2.msra.mxu0 0.0
  %1563 = vmatprep.subr.mxu0 0.0
  %1564 = vmatpush2.msra.mxu0 0.0
  %1565 = vmatprep.subr.mxu0 0.0
  %1566 = vmatpush2.msra.mxu0 0.0
  %1567 = vmatprep.subr.mxu0 0.0
  %1568 = vmatpush2.msra.mxu0 0.0
  %1569 = vmatprep.mubr.f32.mxu0 0.0
  %1570 = vmatmul.mubr.f32.gmra.mxu0 %v1428
  %v1571 = vpop.f32.mrf.mxu0
  %v1572 = vadd.f32 0.0, %v1571
  %v1573 = vpop.f32.mrf.mxu0
  %v1574 = vadd.f32 0.0, %v1573
  %1575 = vdwg.mxu0
  %v1576 = vadd.f32 %v1430, %v1501
  %v1577 = vadd.f32 %v1431, %v1503
  %v1578 = vadd.f32 %v1432, %v1572
  %v1579 = vadd.f32 %v1433, %v1574
  %v1580 = vmul.f32 %v1576, 0.5
  %v1581 = vtanh.pop %v1580
  %v1582 = vmul.f32 %v1581, 0.5
  %v1583 = vadd.f32 %v1582, 0.5
  %v1584 = vmul.f32 %v1577, 0.5
  %v1585 = vtanh.pop %v1584
  %v1586 = vmul.f32 %v1585, 0.5
  %v1587 = vadd.f32 %v1586, 0.5
  %v1588 = vtanh.pop %v1578
  %v1589 = vmul.f32 %v1579, 0.5
  %v1590 = vtanh.pop %v1589
  %v1591 = vmul.f32 %v1590, 0.5
  %v1592 = vadd.f32 %v1591, 0.5
  %v1593 = vmul.f32 %v1587, %v1426
  %v1594 = vmul.f32 %v1583, %v1588
  %v1595 = vadd.f32 %v1593, %v1594
  %v1596 = vtanh.pop %v1595
  %v1597 = vmul.f32 %v1592, %v1596
  %s1598 = scalar_lea.vmem [#allocation2], 224
  %v1599 = vld [vmem:[%s1598] sm:$0xff]
  %v1600 = vld [vmem:[%s1598 + $0x8] sm:$0xff]
  %v1601 = vld [vmem:[%s1598 + $0x10] sm:$0xff]
  %v1602 = vld [vmem:[%s1598 + $0x18] sm:$0xff]
  %1603 = vmatprep.subr.mxu0 %v417
  %1604 = vmatpush1.msra.mxu0 %v416
  %1605 = vmatprep.subr.mxu0 %v413
  %1606 = vmatpush1.msra.mxu0 %v412
  %1607 = vmatprep.subr.mxu0 %v409
  %1608 = vmatpush1.msra.mxu0 %v408
  %1609 = vmatprep.subr.mxu0 %v405
  %1610 = vmatpush1.msra.mxu0 %v404
  %1611 = vmatprep.subr.mxu0 %v401
  %1612 = vmatpush1.msra.mxu0 %v400
  %1613 = vmatprep.subr.mxu0 %v397
  %1614 = vmatpush1.msra.mxu0 %v396
  %1615 = vmatprep.subr.mxu0 %v393
  %1616 = vmatpush1.msra.mxu0 %v392
  %1617 = vmatprep.subr.mxu0 %v389
  %1618 = vmatpush1.msra.mxu0 %v388
  %1619 = vmatprep.subr.mxu0 %v385
  %1620 = vmatpush1.msra.mxu0 %v384
  %1621 = vmatprep.subr.mxu0 %v381
  %1622 = vmatpush1.msra.mxu0 %v380
  %1623 = vmatprep.subr.mxu0 %v377
  %1624 = vmatpush1.msra.mxu0 %v376
  %1625 = vmatprep.subr.mxu0 %v373
  %1626 = vmatpush1.msra.mxu0 %v372
  %1627 = vmatprep.subr.mxu0 %v369
  %1628 = vmatpush1.msra.mxu0 %v368
  %1629 = vmatprep.subr.mxu0 %v365
  %1630 = vmatpush1.msra.mxu0 %v364
  %1631 = vmatprep.subr.mxu0 %v361
  %1632 = vmatpush1.msra.mxu0 %v360
  %1633 = vmatprep.subr.mxu0 %v357
  %1634 = vmatpush1.msra.mxu0 %v356
  %1635 = vmatprep.subr.mxu0 0.0
  %1636 = vmatpush2.msra.mxu0 0.0
  %1637 = vmatprep.subr.mxu0 0.0
  %1638 = vmatpush2.msra.mxu0 0.0
  %1639 = vmatprep.subr.mxu0 0.0
  %1640 = vmatpush2.msra.mxu0 0.0
  %1641 = vmatprep.subr.mxu0 0.0
  %1642 = vmatpush2.msra.mxu0 0.0
  %1643 = vmatprep.subr.mxu0 0.0
  %1644 = vmatpush2.msra.mxu0 0.0
  %1645 = vmatprep.subr.mxu0 0.0
  %1646 = vmatpush2.msra.mxu0 0.0
  %1647 = vmatprep.subr.mxu0 0.0
  %1648 = vmatpush2.msra.mxu0 0.0
  %1649 = vmatprep.subr.mxu0 0.0
  %1650 = vmatpush2.msra.mxu0 0.0
  %1651 = vmatprep.subr.mxu0 0.0
  %1652 = vmatpush2.msra.mxu0 0.0
  %1653 = vmatprep.subr.mxu0 0.0
  %1654 = vmatpush2.msra.mxu0 0.0
  %1655 = vmatprep.subr.mxu0 0.0
  %1656 = vmatpush2.msra.mxu0 0.0
  %1657 = vmatprep.subr.mxu0 0.0
  %1658 = vmatpush2.msra.mxu0 0.0
  %1659 = vmatprep.subr.mxu0 0.0
  %1660 = vmatpush2.msra.mxu0 0.0
  %1661 = vmatprep.subr.mxu0 0.0
  %1662 = vmatpush2.msra.mxu0 0.0
  %1663 = vmatprep.subr.mxu0 0.0
  %1664 = vmatpush2.msra.mxu0 0.0
  %1665 = vmatprep.subr.mxu0 0.0
  %1666 = vmatpush2.msra.mxu0 0.0
  %1667 = vmatprep.mubr.f32.mxu0 0.0
  %1668 = vmatmul.mubr.f32.gmra.mxu0 %v1597
  %v1669 = vpop.f32.mrf.mxu0
  %v1670 = vadd.f32 0.0, %v1669
  %v1671 = vpop.f32.mrf.mxu0
  %v1672 = vadd.f32 0.0, %v1671
  %1673 = vdwg.mxu0
  %1674 = vmatprep.subr.mxu0 %v419
  %1675 = vmatpush1.msra.mxu0 %v418
  %1676 = vmatprep.subr.mxu0 %v415
  %1677 = vmatpush1.msra.mxu0 %v414
  %1678 = vmatprep.subr.mxu0 %v411
  %1679 = vmatpush1.msra.mxu0 %v410
  %1680 = vmatprep.subr.mxu0 %v407
  %1681 = vmatpush1.msra.mxu0 %v406
  %1682 = vmatprep.subr.mxu0 %v403
  %1683 = vmatpush1.msra.mxu0 %v402
  %1684 = vmatprep.subr.mxu0 %v399
  %1685 = vmatpush1.msra.mxu0 %v398
  %1686 = vmatprep.subr.mxu0 %v395
  %1687 = vmatpush1.msra.mxu0 %v394
  %1688 = vmatprep.subr.mxu0 %v391
  %1689 = vmatpush1.msra.mxu0 %v390
  %1690 = vmatprep.subr.mxu0 %v387
  %1691 = vmatpush1.msra.mxu0 %v386
  %1692 = vmatprep.subr.mxu0 %v383
  %1693 = vmatpush1.msra.mxu0 %v382
  %1694 = vmatprep.subr.mxu0 %v379
  %1695 = vmatpush1.msra.mxu0 %v378
  %1696 = vmatprep.subr.mxu0 %v375
  %1697 = vmatpush1.msra.mxu0 %v374
  %1698 = vmatprep.subr.mxu0 %v371
  %1699 = vmatpush1.msra.mxu0 %v370
  %1700 = vmatprep.subr.mxu0 %v367
  %1701 = vmatpush1.msra.mxu0 %v366
  %1702 = vmatprep.subr.mxu0 %v363
  %1703 = vmatpush1.msra.mxu0 %v362
  %1704 = vmatprep.subr.mxu0 %v359
  %1705 = vmatpush1.msra.mxu0 %v358
  %1706 = vmatprep.subr.mxu0 0.0
  %1707 = vmatpush2.msra.mxu0 0.0
  %1708 = vmatprep.subr.mxu0 0.0
  %1709 = vmatpush2.msra.mxu0 0.0
  %1710 = vmatprep.subr.mxu0 0.0
  %1711 = vmatpush2.msra.mxu0 0.0
  %1712 = vmatprep.subr.mxu0 0.0
  %1713 = vmatpush2.msra.mxu0 0.0
  %1714 = vmatprep.subr.mxu0 0.0
  %1715 = vmatpush2.msra.mxu0 0.0
  %1716 = vmatprep.subr.mxu0 0.0
  %1717 = vmatpush2.msra.mxu0 0.0
  %1718 = vmatprep.subr.mxu0 0.0
  %1719 = vmatpush2.msra.mxu0 0.0
  %1720 = vmatprep.subr.mxu0 0.0
  %1721 = vmatpush2.msra.mxu0 0.0
  %1722 = vmatprep.subr.mxu0 0.0
  %1723 = vmatpush2.msra.mxu0 0.0
  %1724 = vmatprep.subr.mxu0 0.0
  %1725 = vmatpush2.msra.mxu0 0.0
  %1726 = vmatprep.subr.mxu0 0.0
  %1727 = vmatpush2.msra.mxu0 0.0
  %1728 = vmatprep.subr.mxu0 0.0
  %1729 = vmatpush2.msra.mxu0 0.0
  %1730 = vmatprep.subr.mxu0 0.0
  %1731 = vmatpush2.msra.mxu0 0.0
  %1732 = vmatprep.subr.mxu0 0.0
  %1733 = vmatpush2.msra.mxu0 0.0
  %1734 = vmatprep.subr.mxu0 0.0
  %1735 = vmatpush2.msra.mxu0 0.0
  %1736 = vmatprep.subr.mxu0 0.0
  %1737 = vmatpush2.msra.mxu0 0.0
  %1738 = vmatprep.mubr.f32.mxu0 0.0
  %1739 = vmatmul.mubr.f32.gmra.mxu0 %v1597
  %v1740 = vpop.f32.mrf.mxu0
  %v1741 = vadd.f32 0.0, %v1740
  %v1742 = vpop.f32.mrf.mxu0
  %v1743 = vadd.f32 0.0, %v1742
  %1744 = vdwg.mxu0
  %v1745 = vadd.f32 %v1599, %v1670
  %v1746 = vadd.f32 %v1600, %v1672
  %v1747 = vadd.f32 %v1601, %v1741
  %v1748 = vadd.f32 %v1602, %v1743
  %v1749 = vmul.f32 %v1745, 0.5
  %v1750 = vtanh.pop %v1749
  %v1751 = vmul.f32 %v1750, 0.5
  %v1752 = vadd.f32 %v1751, 0.5
  %v1753 = vmul.f32 %v1746, 0.5
  %v1754 = vtanh.pop %v1753
  %v1755 = vmul.f32 %v1754, 0.5
  %v1756 = vadd.f32 %v1755, 0.5
  %v1757 = vtanh.pop %v1747
  %v1758 = vmul.f32 %v1748, 0.5
  %v1759 = vtanh.pop %v1758
  %v1760 = vmul.f32 %v1759, 0.5
  %v1761 = vadd.f32 %v1760, 0.5
  %v1762 = vmul.f32 %v1756, %v1595
  %v1763 = vmul.f32 %v1752, %v1757
  %v1764 = vadd.f32 %v1762, %v1763
  %v1765 = vtanh.pop %v1764
  %v1766 = vmul.f32 %v1761, %v1765
  %v1767 = vld [vmem:[%s4] sm:$0xff]
  %v1768 = vld [vmem:[%s4 + $0x8] sm:$0xff]
  %v1769 = vld [vmem:[%s4 + $0x10] sm:$0xff]
  %v1770 = vld [vmem:[%s4 + $0x18] sm:$0xff]
  %v1771 = vld [vmem:[%s4 + $0x20] sm:$0xff]
  %v1772 = vld [vmem:[%s4 + $0x28] sm:$0xff]
  %v1773 = vld [vmem:[%s4 + $0x30] sm:$0xff]
  %v1774 = vld [vmem:[%s4 + $0x38] sm:$0xff]
  %v1775 = vld [vmem:[%s4 + $0x40] sm:$0xff]
  %v1776 = vld [vmem:[%s4 + $0x48] sm:$0xff]
  %v1777 = vld [vmem:[%s4 + $0x50] sm:$0xff]
  %v1778 = vld [vmem:[%s4 + $0x58] sm:$0xff]
  %v1779 = vld [vmem:[%s4 + $0x60] sm:$0xff]
  %v1780 = vld [vmem:[%s4 + $0x68] sm:$0xff]
  %v1781 = vld [vmem:[%s4 + $0x70] sm:$0xff]
  %v1782 = vld [vmem:[%s4 + $0x78] sm:$0xff]
  %v1783 = vld [vmem:[%s5] sm:$0x1]
  %v1785 = vlaneseq
  %v1786 = vshrl.u32 %v1785, 7
  %v1787 = vsub.s32 0, %v1786
  %v1788 = vrot.slane %v1783, %v1787
  %1790 = vmatprep.subr.mxu0 0.0
  %1791 = vmatpush1.msra.mxu0 %v1782
  %1792 = vmatprep.subr.mxu0 0.0
  %1793 = vmatpush1.msra.mxu0 %v1781
  %1794 = vmatprep.subr.mxu0 0.0
  %1795 = vmatpush1.msra.mxu0 %v1780
  %1796 = vmatprep.subr.mxu0 0.0
  %1797 = vmatpush1.msra.mxu0 %v1779
  %1798 = vmatprep.subr.mxu0 0.0
  %1799 = vmatpush1.msra.mxu0 %v1778
  %1800 = vmatprep.subr.mxu0 0.0
  %1801 = vmatpush1.msra.mxu0 %v1777
  %1802 = vmatprep.subr.mxu0 0.0
  %1803 = vmatpush1.msra.mxu0 %v1776
  %1804 = vmatprep.subr.mxu0 0.0
  %1805 = vmatpush1.msra.mxu0 %v1775
  %1806 = vmatprep.subr.mxu0 0.0
  %1807 = vmatpush1.msra.mxu0 %v1774
  %1808 = vmatprep.subr.mxu0 0.0
  %1809 = vmatpush1.msra.mxu0 %v1773
  %1810 = vmatprep.subr.mxu0 0.0
  %1811 = vmatpush1.msra.mxu0 %v1772
  %1812 = vmatprep.subr.mxu0 0.0
  %1813 = vmatpush1.msra.mxu0 %v1771
  %1814 = vmatprep.subr.mxu0 0.0
  %1815 = vmatpush1.msra.mxu0 %v1770
  %1816 = vmatprep.subr.mxu0 0.0
  %1817 = vmatpush1.msra.mxu0 %v1769
  %1818 = vmatprep.subr.mxu0 0.0
  %1819 = vmatpush1.msra.mxu0 %v1768
  %1820 = vmatprep.subr.mxu0 0.0
  %1821 = vmatpush1.msra.mxu0 %v1767
  %1822 = vmatprep.subr.mxu0 0.0
  %1823 = vmatpush2.msra.mxu0 0.0
  %1824 = vmatprep.subr.mxu0 0.0
  %1825 = vmatpush2.msra.mxu0 0.0
  %1826 = vmatprep.subr.mxu0 0.0
  %1827 = vmatpush2.msra.mxu0 0.0
  %1828 = vmatprep.subr.mxu0 0.0
  %1829 = vmatpush2.msra.mxu0 0.0
  %1830 = vmatprep.subr.mxu0 0.0
  %1831 = vmatpush2.msra.mxu0 0.0
  %1832 = vmatprep.subr.mxu0 0.0
  %1833 = vmatpush2.msra.mxu0 0.0
  %1834 = vmatprep.subr.mxu0 0.0
  %1835 = vmatpush2.msra.mxu0 0.0
  %1836 = vmatprep.subr.mxu0 0.0
  %1837 = vmatpush2.msra.mxu0 0.0
  %1838 = vmatprep.subr.mxu0 0.0
  %1839 = vmatpush2.msra.mxu0 0.0
  %1840 = vmatprep.subr.mxu0 0.0
  %1841 = vmatpush2.msra.mxu0 0.0
  %1842 = vmatprep.subr.mxu0 0.0
  %1843 = vmatpush2.msra.mxu0 0.0
  %1844 = vmatprep.subr.mxu0 0.0
  %1845 = vmatpush2.msra.mxu0 0.0
  %1846 = vmatprep.subr.mxu0 0.0
  %1847 = vmatpush2.msra.mxu0 0.0
  %1848 = vmatprep.subr.mxu0 0.0
  %1849 = vmatpush2.msra.mxu0 0.0
  %1850 = vmatprep.subr.mxu0 0.0
  %1851 = vmatpush2.msra.mxu0 0.0
  %1852 = vmatprep.subr.mxu0 0.0
  %1853 = vmatpush2.msra.mxu0 0.0
  %1854 = vmatprep.mubr.f32.mxu0 0.0
  %1855 = vmatmul.mubr.f32.gmra.mxu0 %v1766
  %v1856 = vpop.f32.mrf.mxu0
  %v1857 = vadd.f32 %v1788, %v1856
  %v1858 = vpop.f32.mrf.mxu0
  %1859 = vdwg.mxu0
  %1860 = vst [vmem:[%s8] sm:$0xff] %v1857
  // Predicated region
  $region34: #{lstm_forward.1} parent=0 // pred_check
    _
  $region35: #{lstm_forward.1} parent=0 // pred_check_branch
    %1862 = sbr.rel (0) target = $region37
  $region36: #{lstm_forward.1} parent=0 // pred_region
    _
  $region37: #{lstm_forward.1} parent=0 // pred_fallthru
    _
  // Predicated region
  $region38: #{lstm_forward.1} parent=0 // pred_check
    _
  $region39: #{lstm_forward.1} parent=0 // pred_check_branch
    %1864 = sbr.rel (0) target = $region41
  $region40: #{lstm_forward.1} parent=0 // pred_region
    _
  $region41: #{lstm_forward.1} parent=0 // pred_fallthru
    _

</llo_original>
